<compile_context>
chip_gen: v7x
topology: tpu7x:2x2x1
jax: 0.10.0
libtpu: 0.0.40
codegen_flags: <defaults>
</compile_context>

<pallas_src>
import jax
import jax.numpy as jnp
from jax.experimental import pallas as pl
from jax.experimental.pallas import tpu as pltpu

EPS = 1e-5  # nn.BatchNorm1d default eps


def _round_up(n, m):
    return ((n + m - 1) // m) * m


# --------------------------------------------------------------------------
# Kernel: (pooled, sim) -> PReLU(fc1+bn1) -> PReLU(fc2+bn2)
# All BN / backbone algebra is pre-folded into wp/w1b/b1/w2/b2 by the wrapper.
# --------------------------------------------------------------------------
def mymodel_kernel(alpha_ref,                 # SMEM (2,)  [a1, a2] (scalar prefetch)
                   pooled_ref, sim_ref,       # [TB, C]  , [TB, S]     f32
                   wp_ref, w1b_ref, b1_ref,   # [C, D1]  , [S, D1] bf16, [1, D1] f32
                   w2_ref, b2_ref,            # [D1, D2] bf16, [1, D2] f32
                   out_ref):                  # [TB, D2] f32
    a1 = alpha_ref[0]
    a2 = alpha_ref[1]

    # fc1 over concat(features, similarity_features), with the linear backbone
    # stand-in and bn1 folded in offline. bf16 operands, f32 MXU accumulation.
    y = (jnp.dot(pooled_ref[...].astype(jnp.bfloat16), wp_ref[...],
                 preferred_element_type=jnp.float32)
         + jnp.dot(sim_ref[...].astype(jnp.bfloat16), w1b_ref[...],
                   preferred_element_type=jnp.float32)
         + b1_ref[...])
    # PReLU (single shared alpha) ; Dropout(p=0.5) is identity in eval mode
    y = jnp.where(y > 0, y, a1 * y)

    # fc2 (+ folded bn2) -> PReLU
    z = (jnp.dot(y.astype(jnp.bfloat16), w2_ref[...],
                 preferred_element_type=jnp.float32)
         + b2_ref[...])
    z = jnp.where(z > 0, z, a2 * z)

    out_ref[...] = z


# --------------------------------------------------------------------------
# Parameters (synthetic, shapes match MyModel.__init__) and offline folding
# --------------------------------------------------------------------------
def make_params(key, C, new_input_size):
    """Deterministic synthetic parameters in the original (unfused) layout."""
    D1 = 512 + new_input_size          # input_size
    D2 = 512                           # intermediate_size
    ks = jax.random.split(key, 12)
    f32 = jnp.float32

    p = {}
    # TODO(synk): the real MetaIQA resnet18 backbone (loaded from a .pt
    # checkpoint) cannot be reproduced here; stand-in = global average pool
    # over spatial dims + linear projection to 512 features.
    p["wf"] = jax.random.normal(ks[0], (C, 512), f32) * 0.2
    p["bf"] = jax.random.normal(ks[1], (1, 512), f32) * 0.05
    # fc1: Linear(D1, D1), stored as [in, out]
    p["w1"] = jax.random.normal(ks[2], (D1, D1), f32) * (1.0 / jnp.sqrt(D1))
    p["b1"] = jax.random.normal(ks[3], (1, D1), f32) * 0.05
    # bn1 (eval-mode running stats + affine)
    p["g1"] = 1.0 + 0.1 * jax.random.normal(ks[4], (1, D1), f32)
    p["be1"] = 0.05 * jax.random.normal(ks[5], (1, D1), f32)
    p["rm1"] = 0.1 * jax.random.normal(ks[6], (1, D1), f32)
    p["rv1"] = 1.0 + 0.1 * jax.random.uniform(ks[7], (1, D1), f32)
    p["a1"] = jnp.float32(0.25)        # PReLU default init
    # fc2: Linear(D1, D2)
    p["w2"] = jax.random.normal(ks[8], (D1, D2), f32) * (1.0 / jnp.sqrt(D1))
    p["b2"] = jax.random.normal(ks[9], (1, D2), f32) * 0.05
    # bn2
    p["g2"] = 1.0 + 0.1 * jax.random.normal(ks[10], (1, D2), f32)
    p["be2"] = 0.05 * jax.random.normal(ks[11], (1, D2), f32)
    p["rm2"] = jnp.zeros((1, D2), f32)
    p["rv2"] = jnp.ones((1, D2), f32)
    p["a2"] = jnp.float32(0.25)
    return p


def fold_params(p):
    """Fold eval-mode BN into the fc weights and fuse the (linear) backbone
    stand-in with fc1. Exact algebra in f32; large weights cast to bf16."""
    # bn1 fold: y_bn = y * s1 - rm1*s1 + be1 with s1 = g1 * rsqrt(rv1 + eps)
    s1 = p["g1"] * jax.lax.rsqrt(p["rv1"] + EPS)                 # [1, D1]
    w1a = p["w1"][:512, :] * s1                                  # features part
    w1b = p["w1"][512:, :] * s1                                  # similarity part
    b1 = (p["b1"] - p["rm1"]) * s1 + p["be1"]
    # backbone stand-in is affine -> compose with fc1 (exact while linear):
    #   feats @ w1a = (pooled @ wf + bf) @ w1a = pooled @ (wf @ w1a) + bf @ w1a
    wp = p["wf"] @ w1a                                           # [C, D1]
    b1 = p["bf"] @ w1a + b1                                      # [1, D1]
    # bn2 fold into fc2
    s2 = p["g2"] * jax.lax.rsqrt(p["rv2"] + EPS)                 # [1, D2]
    w2 = p["w2"] * s2
    b2 = (p["b2"] - p["rm2"]) * s2 + p["be2"]
    return {
        "wp": wp.astype(jnp.bfloat16),
        "w1b": w1b.astype(jnp.bfloat16),
        "b1": b1.astype(jnp.float32),
        "w2": w2.astype(jnp.bfloat16),
        "b2": b2.astype(jnp.float32),
        "alphas": jnp.array([p["a1"], p["a2"]], jnp.float32),
    }


# --------------------------------------------------------------------------
# Wrapper
# --------------------------------------------------------------------------
def mymodel_forward(x, similarity_features, fp):
    B, C, H, W = x.shape
    # Backbone stand-in's global average pool, hoisted out of the kernel
    # (layout plumbing: removes the spatial DMA + XLU reduction in-kernel).
    pooled = jnp.mean(x.reshape(B, C, H * W).astype(jnp.float32), axis=-1)  # [B, C]
    sim = similarity_features.astype(jnp.float32)                          # [B, S]
    S = sim.shape[1]
    D1 = fp["w1b"].shape[1]
    D2 = fp["w2"].shape[1]

    # Batch tiling: sublane-aligned tile, weights resident across the grid.
    B_pad = _round_up(B, 8)
    TILE_B = min(B_pad, 128)
    B_pad = _round_up(B_pad, TILE_B)
    if B_pad != B:
        pooled = jnp.pad(pooled, ((0, B_pad - B), (0, 0)))
        sim = jnp.pad(sim, ((0, B_pad - B), (0, 0)))

    grid = (B_pad // TILE_B,)
    const = lambda i, a: (0, 0)       # resident weights/biases (no re-DMA)
    tiled = lambda i, a: (i, 0)       # activations / output tiled over batch

    out = pl.pallas_call(
        mymodel_kernel,
        out_shape=jax.ShapeDtypeStruct((B_pad, D2), jnp.float32),
        grid_spec=pltpu.PrefetchScalarGridSpec(
            num_scalar_prefetch=1,                    # alphas -> SMEM
            grid=grid,
            in_specs=[
                pl.BlockSpec((TILE_B, C), tiled),     # pooled
                pl.BlockSpec((TILE_B, S), tiled),     # similarity features
                pl.BlockSpec((C, D1), const),         # fused wp (bf16)
                pl.BlockSpec((S, D1), const),         # w1b (bf16)
                pl.BlockSpec((1, D1), const),         # fused bias1 (f32)
                pl.BlockSpec((D1, D2), const),        # w2 (bf16)
                pl.BlockSpec((1, D2), const),         # bias2 (f32)
            ],
            out_specs=pl.BlockSpec((TILE_B, D2), tiled),
        ),
        compiler_params=pltpu.CompilerParams(
            dimension_semantics=("parallel",)),
    )(fp["alphas"], pooled, sim, fp["wp"], fp["w1b"], fp["b1"], fp["w2"], fp["b2"])
    return out[:B]


# --------------------------------------------------------------------------
# References for correctness checking
# --------------------------------------------------------------------------
def reference_forward(x, sim, p):
    """Plain-JAX, unfused, full-f32 reference (matches the PyTorch module)."""
    B, C, H, W = x.shape
    pooled = jnp.mean(x.reshape(B, C, H * W), axis=-1)
    feats = pooled @ p["wf"] + p["bf"]
    y = feats @ p["w1"][:512, :] + sim @ p["w1"][512:, :] + p["b1"]
    y = (y - p["rm1"]) / jnp.sqrt(p["rv1"] + EPS) * p["g1"] + p["be1"]
    y = jnp.where(y > 0, y, p["a1"] * y)
    z = y @ p["w2"] + p["b2"]
    z = (z - p["rm2"]) / jnp.sqrt(p["rv2"] + EPS) * p["g2"] + p["be2"]
    z = jnp.where(z > 0, z, p["a2"] * z)
    return z


def reference_forward_folded(x, sim, fp):
    """Plain-JAX reference using the exact folded bf16 params / kernel math."""
    B, C, H, W = x.shape
    pooled = jnp.mean(x.reshape(B, C, H * W).astype(jnp.float32), axis=-1)
    y = (jnp.dot(pooled.astype(jnp.bfloat16), fp["wp"],
                 preferred_element_type=jnp.float32)
         + jnp.dot(sim.astype(jnp.bfloat16), fp["w1b"],
                   preferred_element_type=jnp.float32)
         + fp["b1"])
    y = jnp.where(y > 0, y, fp["alphas"][0] * y)
    z = (jnp.dot(y.astype(jnp.bfloat16), fp["w2"],
                 preferred_element_type=jnp.float32)
         + fp["b2"])
    z = jnp.where(z > 0, z, fp["alphas"][1] * z)
    return z


if __name__ == "__main__":
    key = jax.random.PRNGKey(0)
    k_x, k_s, k_p = jax.random.split(key, 3)

    B, C, H, W = 8, 4, 16, 16        # image input (NCHW)
    new_input_size = 32              # similarity feature width

    x = jax.random.normal(k_x, (B, C, H, W), jnp.float32)
    similarity_features = jax.random.normal(k_s, (B, new_input_size), jnp.float32)
    params = make_params(k_p, C, new_input_size)
    folded = fold_params(params)

    out = mymodel_forward(x, similarity_features, folded)
    out = jax.block_until_ready(out)
    assert out.shape == (B, 512), out.shape

    # Tight check: kernel vs plain-JAX with identical folded bf16 params.
    ref_folded = reference_forward_folded(x, similarity_features, folded)
    assert jnp.allclose(out, ref_folded, atol=1e-3, rtol=1e-3), \
        "mismatch vs folded-bf16 reference"

    # Loose check: kernel vs unfused full-f32 module semantics
    # (bf16 weight storage => expect ~1e-2 relative error).
    ref = reference_forward(x, similarity_features, params)
    assert jnp.allclose(out, ref, atol=2e-2, rtol=2e-2), \
        "mismatch vs f32 module reference"

    print("KERNEL_OK")
</pallas_src>

<mosaic_0001>
module attributes {stable_mosaic.version = 11 : i64} {
  func.func @mymodel_kernel(%arg0: i32, %arg1: memref<2xf32, #tpu.memory_space<smem>>, %arg2: memref<8x4xf32, #tpu.memory_space<vmem>>, %arg3: memref<8x32xf32, #tpu.memory_space<vmem>>, %arg4: memref<4x544xbf16, #tpu.memory_space<vmem>>, %arg5: memref<32x544xbf16, #tpu.memory_space<vmem>>, %arg6: memref<1x544xf32, #tpu.memory_space<vmem>>, %arg7: memref<544x512xbf16, #tpu.memory_space<vmem>>, %arg8: memref<1x512xf32, #tpu.memory_space<vmem>>, %arg9: memref<8x512xf32, #tpu.memory_space<vmem>>) attributes {dimension_semantics = [#tpu.dimension_semantics<parallel>], iteration_bounds = array<i64: 1>, scalar_prefetch = 1 : i64, scratch_operands = 0 : i64, tpu.core_type = #tpu.core_type<tc>, window_params = [{transform_indices = @transform_0, window_bounds = array<i64: 8, 4>}, {transform_indices = @transform_1, window_bounds = array<i64: 8, 32>}, {pipeline_mode = #tpu.pipeline_mode<synchronous>, transform_indices = @transform_2, window_bounds = array<i64: 4, 544>}, {pipeline_mode = #tpu.pipeline_mode<synchronous>, transform_indices = @transform_3, window_bounds = array<i64: 32, 544>}, {pipeline_mode = #tpu.pipeline_mode<synchronous>, transform_indices = @transform_4, window_bounds = array<i64: 1, 544>}, {pipeline_mode = #tpu.pipeline_mode<synchronous>, transform_indices = @transform_5, window_bounds = array<i64: 544, 512>}, {pipeline_mode = #tpu.pipeline_mode<synchronous>, transform_indices = @transform_6, window_bounds = array<i64: 1, 512>}, {transform_indices = @transform_7, window_bounds = array<i64: 8, 512>}]} {
    %c0 = arith.constant 0 : index
    %0 = memref.load %arg1[%c0] : memref<2xf32, #tpu.memory_space<smem>>
    %c1 = arith.constant 1 : index
    %1 = memref.load %arg1[%c1] : memref<2xf32, #tpu.memory_space<smem>>
    %c0_0 = arith.constant 0 : index
    %c0_1 = arith.constant 0 : index
    %2 = vector.load %arg2[%c0_0, %c0_1] : memref<8x4xf32, #tpu.memory_space<vmem>>, vector<8x4xf32>
    %3 = arith.truncf %2 : vector<8x4xf32> to vector<8x4xbf16>
    %c0_2 = arith.constant 0 : index
    %c0_3 = arith.constant 0 : index
    %4 = vector.load %arg4[%c0_2, %c0_3] : memref<4x544xbf16, #tpu.memory_space<vmem>>, vector<4x544xbf16>
    %cst = arith.constant dense<0.000000e+00> : vector<8x544xf32>
    %5 = tpu.matmul %3, %4, %cst {dimension_numbers = #tpu.dot_dimension_numbers<[1], [0], [0], [1], [0, 0, 1, 1], [], []>} : vector<8x4xbf16>, vector<4x544xbf16>, vector<8x544xf32> -> vector<8x544xf32>
    %c0_4 = arith.constant 0 : index
    %c0_5 = arith.constant 0 : index
    %6 = vector.load %arg3[%c0_4, %c0_5] : memref<8x32xf32, #tpu.memory_space<vmem>>, vector<8x32xf32>
    %7 = arith.truncf %6 : vector<8x32xf32> to vector<8x32xbf16>
    %c0_6 = arith.constant 0 : index
    %c0_7 = arith.constant 0 : index
    %8 = vector.load %arg5[%c0_6, %c0_7] : memref<32x544xbf16, #tpu.memory_space<vmem>>, vector<32x544xbf16>
    %cst_8 = arith.constant dense<0.000000e+00> : vector<8x544xf32>
    %9 = tpu.matmul %7, %8, %cst_8 {dimension_numbers = #tpu.dot_dimension_numbers<[1], [0], [0], [1], [0, 0, 1, 1], [], []>} : vector<8x32xbf16>, vector<32x544xbf16>, vector<8x544xf32> -> vector<8x544xf32>
    %10 = arith.addf %5, %9 : vector<8x544xf32>
    %c0_9 = arith.constant 0 : index
    %c0_10 = arith.constant 0 : index
    %11 = vector.load %arg6[%c0_9, %c0_10] : memref<1x544xf32, #tpu.memory_space<vmem>>, vector<1x544xf32>
    %12 = vector.broadcast %11 : vector<1x544xf32> to vector<8x544xf32>
    %13 = arith.addf %10, %12 : vector<8x544xf32>
    %cst_11 = arith.constant 0.000000e+00 : f32
    %14 = vector.broadcast %cst_11 : f32 to vector<8x544xf32>
    %15 = arith.cmpf ogt, %13, %14 : vector<8x544xf32>
    %16 = vector.broadcast %0 : f32 to vector<8x544xf32>
    %17 = arith.mulf %16, %13 : vector<8x544xf32>
    %18 = arith.select %15, %13, %17 : vector<8x544xi1>, vector<8x544xf32>
    %19 = arith.truncf %18 : vector<8x544xf32> to vector<8x544xbf16>
    %c0_12 = arith.constant 0 : index
    %c0_13 = arith.constant 0 : index
    %20 = vector.load %arg7[%c0_12, %c0_13] : memref<544x512xbf16, #tpu.memory_space<vmem>>, vector<544x512xbf16>
    %cst_14 = arith.constant dense<0.000000e+00> : vector<8x512xf32>
    %21 = tpu.matmul %19, %20, %cst_14 {dimension_numbers = #tpu.dot_dimension_numbers<[1], [0], [0], [1], [0, 0, 1, 1], [], []>} : vector<8x544xbf16>, vector<544x512xbf16>, vector<8x512xf32> -> vector<8x512xf32>
    %c0_15 = arith.constant 0 : index
    %c0_16 = arith.constant 0 : index
    %22 = vector.load %arg8[%c0_15, %c0_16] : memref<1x512xf32, #tpu.memory_space<vmem>>, vector<1x512xf32>
    %23 = vector.broadcast %22 : vector<1x512xf32> to vector<8x512xf32>
    %24 = arith.addf %21, %23 : vector<8x512xf32>
    %cst_17 = arith.constant 0.000000e+00 : f32
    %25 = vector.broadcast %cst_17 : f32 to vector<8x512xf32>
    %26 = arith.cmpf ogt, %24, %25 : vector<8x512xf32>
    %27 = vector.broadcast %1 : f32 to vector<8x512xf32>
    %28 = arith.mulf %27, %24 : vector<8x512xf32>
    %29 = arith.select %26, %24, %28 : vector<8x512xi1>, vector<8x512xf32>
    %c0_18 = arith.constant 0 : index
    %c0_19 = arith.constant 0 : index
    %30 = vector.load %arg9[%c0_18, %c0_19] : memref<8x512xf32, #tpu.memory_space<vmem>>, vector<8x512xf32>
    tpu.vector_store %arg9[%c0_18, %c0_19], %29 {strides = array<i32>} : memref<8x512xf32, #tpu.memory_space<vmem>>, vector<8x512xf32>,
    return
  }
  func.func @transform_0(%arg0: i32, %arg1: memref<2xf32, #tpu.memory_space<smem>>) -> (i32, i32) {
    %c0_i32 = arith.constant 0 : i32
    %c0_i32_0 = arith.constant 0 : i32
    return %arg0, %c0_i32 : i32, i32
  }
  func.func @transform_1(%arg0: i32, %arg1: memref<2xf32, #tpu.memory_space<smem>>) -> (i32, i32) {
    %c0_i32 = arith.constant 0 : i32
    %c0_i32_0 = arith.constant 0 : i32
    return %arg0, %c0_i32 : i32, i32
  }
  func.func @transform_2(%arg0: i32, %arg1: memref<2xf32, #tpu.memory_space<smem>>) -> (i32, i32) {
    %c0_i32 = arith.constant 0 : i32
    %c0_i32_0 = arith.constant 0 : i32
    %c0_i32_1 = arith.constant 0 : i32
    return %c0_i32, %c0_i32_0 : i32, i32
  }
  func.func @transform_3(%arg0: i32, %arg1: memref<2xf32, #tpu.memory_space<smem>>) -> (i32, i32) {
    %c0_i32 = arith.constant 0 : i32
    %c0_i32_0 = arith.constant 0 : i32
    %c0_i32_1 = arith.constant 0 : i32
    return %c0_i32, %c0_i32_0 : i32, i32
  }
  func.func @transform_4(%arg0: i32, %arg1: memref<2xf32, #tpu.memory_space<smem>>) -> (i32, i32) {
    %c0_i32 = arith.constant 0 : i32
    %c0_i32_0 = arith.constant 0 : i32
    %c0_i32_1 = arith.constant 0 : i32
    return %c0_i32, %c0_i32_0 : i32, i32
  }
  func.func @transform_5(%arg0: i32, %arg1: memref<2xf32, #tpu.memory_space<smem>>) -> (i32, i32) {
    %c0_i32 = arith.constant 0 : i32
    %c0_i32_0 = arith.constant 0 : i32
    %c0_i32_1 = arith.constant 0 : i32
    return %c0_i32, %c0_i32_0 : i32, i32
  }
  func.func @transform_6(%arg0: i32, %arg1: memref<2xf32, #tpu.memory_space<smem>>) -> (i32, i32) {
    %c0_i32 = arith.constant 0 : i32
    %c0_i32_0 = arith.constant 0 : i32
    %c0_i32_1 = arith.constant 0 : i32
    return %c0_i32, %c0_i32_0 : i32, i32
  }
  func.func @transform_7(%arg0: i32, %arg1: memref<2xf32, #tpu.memory_space<smem>>) -> (i32, i32) {
    %c0_i32 = arith.constant 0 : i32
    %c0_i32_0 = arith.constant 0 : i32
    return %arg0, %c0_i32 : i32, i32
  }
}

</mosaic_0001>

<llo_original>
// kernel: tpu_custom_call.1
$region0: #{tpu_custom_call.1}
  #allocation0 [shape = 'u32[]', space=smem, size = 0x4, offset = 0x4, fixed_abs, tag = 'smem constant byte address 0x4 - core index']
  #allocation1 [shape = 'u32[144,128]{1,0:T(1,128)}', space=vmem, size = 0x12000, scoped, tag = 'internal scratch']
  #allocation2 [shape = 's32[1]{0}', space=sflag, size = 0x4, scoped, tag = 'scoped memory for tpu_custom_call.1']
  #allocation3 [shape = 'u8[512]{0}', space=smem, size = 0x200, scoped, tag = 'prefetched SMEM operand 0']
  %s0 = inlined_call_operand.hbm [shape: f32[2], index: 0, kind: input, shape index: {}]
  %s1 = inlined_call_operand.vmem [shape: f32[8,4], index: 1, kind: input, shape index: {}]
  %s2 = inlined_call_operand.vmem [shape: f32[8,32], index: 2, kind: input, shape index: {}]
  %s3 = inlined_call_operand.vmem [shape: bf16[4,544], index: 3, kind: input, shape index: {}]
  %s4 = inlined_call_operand.hbm [shape: bf16[32,544], index: 4, kind: input, shape index: {}]
  %s5 = inlined_call_operand.vmem [shape: f32[1,544], index: 5, kind: input, shape index: {}]
  %s6 = inlined_call_operand.hbm [shape: bf16[544,512], index: 6, kind: input, shape index: {}]
  %s7 = inlined_call_operand.vmem [shape: f32[1,512], index: 7, kind: input, shape index: {}]
  %s8 = inlined_call_operand.hbm [shape: f32[8,512], index: 8, kind: output, shape index: {}]
  %s9 = sld [smem:[#allocation0]]
  $region46: #{tpu_custom_call.1} parent=0
    _
  %s11 = ssub.s32 1, %s9
  %s12 = scalar_select 0, %s11, %s9
  %14 = dma.hbm_to_smem %s0, 16, [#allocation3], [#allocation2]
  %15 = dma.done [#allocation2], 16
  %16 = sfence
  $region1: #{tpu_custom_call.1} parent=0
    #allocation4 [shape = 'u8[40960]{0}', space=vmem, size = 0xa000, scoped, tag = 'input window, operand 4, single buffered']
    #allocation5 [shape = 's32[1]{0}', space=sflag, size = 0x4, scoped, tag = 'scoped memory for tpu_custom_call.1']
    #allocation6 [shape = 's32[1]{0}', space=sflag, size = 0x4, scoped, tag = 'scoped memory for tpu_custom_call.1']
    #allocation7 [shape = 'u8[557056]{0}', space=vmem, size = 0x88000, scoped, tag = 'input window, operand 6, single buffered']
    #allocation8 [shape = 's32[1]{0}', space=sflag, size = 0x4, scoped, tag = 'scoped memory for tpu_custom_call.1']
    #allocation9 [shape = 'u8[16384]{0}', space=vmem, size = 0x4000, scoped, tag = 'output window, operand 0, single buffered']
    %17 = vsyncpa [#allocation5], 0
    %18 = vsyncpa [#allocation8], 0
    %19 = vsyncpa [#allocation6], 0
    // Predicated region
    $region2: #{tpu_custom_call.1} parent=1 // pred_check
      _
    $region3: #{tpu_custom_call.1} parent=1 // pred_check_branch
      %21 = sbr.rel (0) target = $region5
    $region4: #{tpu_custom_call.1} parent=1 // pred_region
      _
    $region5: #{tpu_custom_call.1} parent=1 // pred_fallthru
      _
    // Predicated region
    $region6: #{tpu_custom_call.1} parent=1 // pred_check
      _
    $region7: #{tpu_custom_call.1} parent=1 // pred_check_branch
      %23 = sbr.rel (0) target = $region9
    $region8: #{tpu_custom_call.1} parent=1 // pred_region
      _
    $region9: #{tpu_custom_call.1} parent=1 // pred_fallthru
      _
    // Predicated region
    $region10: #{tpu_custom_call.1} parent=1 // pred_check
      _
    $region11: #{tpu_custom_call.1} parent=1 // pred_check_branch
      %25 = sbr.rel (0) target = $region13
    $region12: #{tpu_custom_call.1} parent=1 // pred_region
      _
    $region13: #{tpu_custom_call.1} parent=1 // pred_fallthru
      _
    // Predicated region
    $region14: #{tpu_custom_call.1} parent=1 // pred_check
      _
    $region15: #{tpu_custom_call.1} parent=1 // pred_check_branch
      %27 = sbr.rel (0) target = $region17
    $region16: #{tpu_custom_call.1} parent=1 // pred_region
      %s29 = ssub.s32 1280, 1280
      %30 = vsyncadd [#allocation5], %s29
      %s31 = sshll.u32 [#allocation4], 4
      %s32 = int_to_ptr.vmem [resolvable:$true] %s31
      %37 = dma.hbm_to_vmem [thread:$0]  %s4, 1280, %s32, [#allocation5], 320, 320, 20
    $region17: #{tpu_custom_call.1} parent=1 // pred_fallthru
      _
    // Predicated region
    $region18: #{tpu_custom_call.1} parent=1 // pred_check
      _
    $region19: #{tpu_custom_call.1} parent=1 // pred_check_branch
      %39 = sbr.rel (0) target = $region21
    $region20: #{tpu_custom_call.1} parent=1 // pred_region
      _
    $region21: #{tpu_custom_call.1} parent=1 // pred_fallthru
      _
    // Predicated region
    $region22: #{tpu_custom_call.1} parent=1 // pred_check
      _
    $region23: #{tpu_custom_call.1} parent=1 // pred_check_branch
      %41 = sbr.rel (0) target = $region25
    $region24: #{tpu_custom_call.1} parent=1 // pred_region
      %s43 = ssub.s32 17408, 17408
      %44 = vsyncadd [#allocation8], %s43
      %s45 = sshll.u32 [#allocation7], 4
      %s46 = int_to_ptr.vmem [resolvable:$true] %s45
      %51 = dma.hbm_to_vmem [thread:$0]  %s6, 17408, %s46, [#allocation8], 256, 256, 16
    $region25: #{tpu_custom_call.1} parent=1 // pred_fallthru
      _
    // Predicated region
    $region26: #{tpu_custom_call.1} parent=1 // pred_check
      _
    $region27: #{tpu_custom_call.1} parent=1 // pred_check_branch
      %53 = sbr.rel (0) target = $region29
    $region28: #{tpu_custom_call.1} parent=1 // pred_region
      _
    $region29: #{tpu_custom_call.1} parent=1 // pred_fallthru
      _
    // Predicated region
    $region30: #{tpu_custom_call.1} parent=1 // pred_check
      _
    $region31: #{tpu_custom_call.1} parent=1 // pred_check_branch
      %55 = sbr.rel (0) target = $region33
    $region32: #{tpu_custom_call.1} parent=1 // pred_region
      %56 = dma.done [#allocation5], 1280
    $region33: #{tpu_custom_call.1} parent=1 // pred_fallthru
      _
    // Predicated region
    $region34: #{tpu_custom_call.1} parent=1 // pred_check
      _
    $region35: #{tpu_custom_call.1} parent=1 // pred_check_branch
      %58 = sbr.rel (0) target = $region37
    $region36: #{tpu_custom_call.1} parent=1 // pred_region
      %59 = dma.done [#allocation8], 17408
    $region37: #{tpu_custom_call.1} parent=1 // pred_fallthru
      _
    %s61 = sld [smem:[#allocation3]]
    %s62 = sld [smem:[#allocation3 + $0x1]]
    %v63 = vld [vmem:[%s1] sm:$0xff]
    %v64 = vpack.c.bf16 %v63, %v63
    %v65 = vld [vmem:[%s3] sm:$0xff]
    %v66 = vld [vmem:[%s3 + $0x8] sm:$0x3]
    %v67 = vld [vmem:[%s2] sm:$0xff]
    %v68 = vpack.c.bf16 %v67, %v67
    %v69 = vld [vmem:[#allocation4] sm:$0xff]
    %v70 = vld [vmem:[#allocation4 + $0x8] sm:$0xff]
    %v71 = vld [vmem:[#allocation4 + $0x10] sm:$0xf]
    %v72 = vld [vmem:[#allocation4 + $0x14] sm:$0xff]
    %v73 = vld [vmem:[#allocation4 + $0x1c] sm:$0xff]
    %v74 = vld [vmem:[#allocation4 + $0x24] sm:$0xf]
    %v75 = vld [vmem:[#allocation4 + $0x28] sm:$0xff]
    %v76 = vld [vmem:[#allocation4 + $0x30] sm:$0xff]
    %v77 = vld [vmem:[#allocation4 + $0x38] sm:$0xf]
    %v78 = vld [vmem:[#allocation4 + $0x3c] sm:$0xff]
    %v79 = vld [vmem:[#allocation4 + $0x44] sm:$0xff]
    %v80 = vld [vmem:[#allocation4 + $0x4c] sm:$0xf]
    %v93 = vunpack.c.l.b16 %v69
    %v94 = vunpack.c.h.b16 %v69
    %v95 = vunpack.c.l.b16 %v70
    %v96 = vunpack.c.h.b16 %v70
    %v97 = vunpack.c.l.b16 %v71
    %v98 = vunpack.c.l.b16 %v72
    %v99 = vunpack.c.h.b16 %v72
    %v100 = vunpack.c.l.b16 %v73
    %v101 = vunpack.c.h.b16 %v73
    %v102 = vunpack.c.l.b16 %v74
    %v103 = vunpack.c.l.b16 %v75
    %v104 = vunpack.c.h.b16 %v75
    %v105 = vunpack.c.l.b16 %v76
    %v106 = vunpack.c.h.b16 %v76
    %v107 = vunpack.c.l.b16 %v77
    %v108 = vunpack.c.l.b16 %v78
    %v109 = vunpack.c.h.b16 %v78
    %v110 = vunpack.c.l.b16 %v79
    %v111 = vunpack.c.h.b16 %v79
    %v112 = vunpack.c.l.b16 %v80
    %v113 = vpack.c.b16 %v98, %v93
    %v114 = vpack.c.b16 %v99, %v94
    %v115 = vpack.c.b16 %v100, %v95
    %v116 = vpack.c.b16 %v101, %v96
    %v117 = vpack.c.b16 %v102, %v97
    %v118 = vpack.c.b16 %v108, %v103
    %v119 = vpack.c.b16 %v109, %v104
    %v120 = vpack.c.b16 %v110, %v105
    %v121 = vpack.c.b16 %v111, %v106
    %v122 = vpack.c.b16 %v112, %v107
    %vm133 = vcmask 261120
    %v135 = vsel %vm133, %v68, 0
    %137 = vmatprep.subr.bf16.mxu0 %v114
    %138 = vmatpush1.bf16.msra.mxu0 %v113
    %139 = vmatprep.subr.bf16.mxu0 %v119
    %140 = vmatpush1.bf16.msra.mxu0 %v118
    %141 = vmatprep.subr.bf16.mxu0 0
    %142 = vmatpush1.bf16.msra.mxu0 0
    %143 = vmatprep.subr.bf16.mxu0 0
    %144 = vmatpush1.bf16.msra.mxu0 0
    %145 = vmatprep.subr.bf16.mxu0 0
    %146 = vmatpush1.bf16.msra.mxu0 0
    %147 = vmatprep.subr.bf16.mxu0 0
    %148 = vmatpush1.bf16.msra.mxu0 0
    %149 = vmatprep.subr.bf16.mxu0 0
    %150 = vmatpush1.bf16.msra.mxu0 0
    %151 = vmatprep.subr.bf16.mxu0 0
    %152 = vmatpush1.bf16.msra.mxu0 0
    %153 = vmatprep.subr.bf16.mxu0 0
    %154 = vmatpush1.bf16.msra.mxu0 0
    %155 = vmatprep.subr.bf16.mxu0 0
    %156 = vmatpush1.bf16.msra.mxu0 0
    %157 = vmatprep.subr.bf16.mxu0 0
    %158 = vmatpush1.bf16.msra.mxu0 0
    %159 = vmatprep.subr.bf16.mxu0 0
    %160 = vmatpush1.bf16.msra.mxu0 0
    %161 = vmatprep.subr.bf16.mxu0 0
    %162 = vmatpush1.bf16.msra.mxu0 0
    %163 = vmatprep.subr.bf16.mxu0 0
    %164 = vmatpush1.bf16.msra.mxu0 0
    %165 = vmatprep.subr.bf16.mxu0 0
    %166 = vmatpush1.bf16.msra.mxu0 0
    %167 = vmatprep.subr.bf16.mxu0 0
    %168 = vmatpush1.bf16.msra.mxu0 0
    %169 = vmatprep.mubr.bf16.mxu0 0
    %170 = vmatmul.mubr.bf16.gmra.mrb[0].mxu0 %v135
    %v171 = vpop.f32.mrb[0].mxu0
    %v172 = vadd.f32 0.0, %v171
    %v173 = vpop.f32.mrb[0].mxu0
    %v174 = vadd.f32 0.0, %v173
    %v175 = vpop.f32.mrb[0].mxu0
    %v176 = vpop.f32.mrb[0].mxu0
    %177 = vdwg.mxu0
    %178 = vmatprep.subr.bf16.mxu0 %v116
    %179 = vmatpush1.bf16.msra.mxu0 %v115
    %180 = vmatprep.subr.bf16.mxu0 %v121
    %181 = vmatpush1.bf16.msra.mxu0 %v120
    %182 = vmatprep.subr.bf16.mxu0 0
    %183 = vmatpush1.bf16.msra.mxu0 0
    %184 = vmatprep.subr.bf16.mxu0 0
    %185 = vmatpush1.bf16.msra.mxu0 0
    %186 = vmatprep.subr.bf16.mxu0 0
    %187 = vmatpush1.bf16.msra.mxu0 0
    %188 = vmatprep.subr.bf16.mxu0 0
    %189 = vmatpush1.bf16.msra.mxu0 0
    %190 = vmatprep.subr.bf16.mxu0 0
    %191 = vmatpush1.bf16.msra.mxu0 0
    %192 = vmatprep.subr.bf16.mxu0 0
    %193 = vmatpush1.bf16.msra.mxu0 0
    %194 = vmatprep.subr.bf16.mxu0 0
    %195 = vmatpush1.bf16.msra.mxu0 0
    %196 = vmatprep.subr.bf16.mxu0 0
    %197 = vmatpush1.bf16.msra.mxu0 0
    %198 = vmatprep.subr.bf16.mxu0 0
    %199 = vmatpush1.bf16.msra.mxu0 0
    %200 = vmatprep.subr.bf16.mxu0 0
    %201 = vmatpush1.bf16.msra.mxu0 0
    %202 = vmatprep.subr.bf16.mxu0 0
    %203 = vmatpush1.bf16.msra.mxu0 0
    %204 = vmatprep.subr.bf16.mxu0 0
    %205 = vmatpush1.bf16.msra.mxu0 0
    %206 = vmatprep.subr.bf16.mxu0 0
    %207 = vmatpush1.bf16.msra.mxu0 0
    %208 = vmatprep.subr.bf16.mxu0 0
    %209 = vmatpush1.bf16.msra.mxu0 0
    %210 = vmatprep.mubr.bf16.mxu0 0
    %211 = vmatmul.mubr.bf16.gmra.mrb[0].mxu0 %v135
    %v212 = vpop.f32.mrb[0].mxu0
    %v213 = vadd.f32 0.0, %v212
    %v214 = vpop.f32.mrb[0].mxu0
    %v215 = vadd.f32 0.0, %v214
    %v216 = vpop.f32.mrb[0].mxu0
    %v217 = vpop.f32.mrb[0].mxu0
    %218 = vdwg.mxu0
    %219 = vmatprep.subr.bf16.mxu0 0
    %220 = vmatpush1.bf16.msra.mxu0 %v117
    %221 = vmatprep.subr.bf16.mxu0 0
    %222 = vmatpush1.bf16.msra.mxu0 %v122
    %223 = vmatprep.subr.bf16.mxu0 0
    %224 = vmatpush1.bf16.msra.mxu0 0
    %225 = vmatprep.subr.bf16.mxu0 0
    %226 = vmatpush1.bf16.msra.mxu0 0
    %227 = vmatprep.subr.bf16.mxu0 0
    %228 = vmatpush1.bf16.msra.mxu0 0
    %229 = vmatprep.subr.bf16.mxu0 0
    %230 = vmatpush1.bf16.msra.mxu0 0
    %231 = vmatprep.subr.bf16.mxu0 0
    %232 = vmatpush1.bf16.msra.mxu0 0
    %233 = vmatprep.subr.bf16.mxu0 0
    %234 = vmatpush1.bf16.msra.mxu0 0
    %235 = vmatprep.subr.bf16.mxu0 0
    %236 = vmatpush1.bf16.msra.mxu0 0
    %237 = vmatprep.subr.bf16.mxu0 0
    %238 = vmatpush1.bf16.msra.mxu0 0
    %239 = vmatprep.subr.bf16.mxu0 0
    %240 = vmatpush1.bf16.msra.mxu0 0
    %241 = vmatprep.subr.bf16.mxu0 0
    %242 = vmatpush1.bf16.msra.mxu0 0
    %243 = vmatprep.subr.bf16.mxu0 0
    %244 = vmatpush1.bf16.msra.mxu0 0
    %245 = vmatprep.subr.bf16.mxu0 0
    %246 = vmatpush1.bf16.msra.mxu0 0
    %247 = vmatprep.subr.bf16.mxu0 0
    %248 = vmatpush1.bf16.msra.mxu0 0
    %249 = vmatprep.subr.bf16.mxu0 0
    %250 = vmatpush1.bf16.msra.mxu0 0
    %251 = vmatprep.mubr.bf16.mxu0 0
    %252 = vmatmul.mubr.bf16.gmra.mrb[0].mxu0 %v135
    %v253 = vpop.f32.mrb[0].mxu0
    %v254 = vadd.f32 0.0, %v253
    %v255 = vpop.f32.mrb[0].mxu0
    %v256 = vpop.f32.mrb[0].mxu0
    %v257 = vpop.f32.mrb[0].mxu0
    %258 = vdwg.mxu0
    %v261 = vcombine.high %v65, %v65
    %v263 = vunpack.c.l.s4 1983009808
    %v264 = vunpack.c.0.s8 %v263
    %v265 = vlaneseq
    %v266 = vshrl.u32 %v265, 7
    %v267 = vsub.s32 %v264, %v266
    %v268 = vrot.slane %v65, %v267
    %v270 = vunpack.c.l.s4 1983009808
    %v271 = vunpack.c.0.s8 %v270
    %v272 = vlaneseq
    %v273 = vshrl.u32 %v272, 7
    %v274 = vsub.s32 %v271, %v273
    %v275 = vrot.slane %v261, %v274
    %v276 = vcombine.high %v268, %v268
    %v277 = vcombine.high %v275, %v275
    %v279 = vunpack.c.l.s4 1983009808
    %v280 = vunpack.c.0.s8 %v279
    %v281 = vlaneseq
    %v282 = vshrl.u32 %v281, 7
    %v283 = vsub.s32 %v280, %v282
    %v284 = vrot.slane %v66, %v283
    %vm285 = vcmask 31744
    %v287 = vsel %vm285, %v64, 0
    %vm289 = vcmask 1041408
    %v291 = vsel %vm289, %v268, 0
    %v294 = vsel %vm289, %v276, 0
    %v297 = vsel %vm289, %v275, 0
    %v300 = vsel %vm289, %v277, 0
    %v303 = vsel %vm289, %v284, 0
    %305 = vmatprep.subr.bf16.mxu0 %v294
    %306 = vmatpush1.bf16.msra.mxu0 %v291
    %307 = vmatprep.subr.bf16.mxu0 0
    %308 = vmatpush1.bf16.msra.mxu0 0
    %309 = vmatprep.subr.bf16.mxu0 0
    %310 = vmatpush1.bf16.msra.mxu0 0
    %311 = vmatprep.subr.bf16.mxu0 0
    %312 = vmatpush1.bf16.msra.mxu0 0
    %313 = vmatprep.subr.bf16.mxu0 0
    %314 = vmatpush1.bf16.msra.mxu0 0
    %315 = vmatprep.subr.bf16.mxu0 0
    %316 = vmatpush1.bf16.msra.mxu0 0
    %317 = vmatprep.subr.bf16.mxu0 0
    %318 = vmatpush1.bf16.msra.mxu0 0
    %319 = vmatprep.subr.bf16.mxu0 0
    %320 = vmatpush1.bf16.msra.mxu0 0
    %321 = vmatprep.subr.bf16.mxu0 0
    %322 = vmatpush1.bf16.msra.mxu0 0
    %323 = vmatprep.subr.bf16.mxu0 0
    %324 = vmatpush1.bf16.msra.mxu0 0
    %325 = vmatprep.subr.bf16.mxu0 0
    %326 = vmatpush1.bf16.msra.mxu0 0
    %327 = vmatprep.subr.bf16.mxu0 0
    %328 = vmatpush1.bf16.msra.mxu0 0
    %329 = vmatprep.subr.bf16.mxu0 0
    %330 = vmatpush1.bf16.msra.mxu0 0
    %331 = vmatprep.subr.bf16.mxu0 0
    %332 = vmatpush1.bf16.msra.mxu0 0
    %333 = vmatprep.subr.bf16.mxu0 0
    %334 = vmatpush1.bf16.msra.mxu0 0
    %335 = vmatprep.subr.bf16.mxu0 0
    %336 = vmatpush1.bf16.msra.mxu0 0
    %337 = vmatprep.mubr.bf16.mxu0 0
    %338 = vmatmul.mubr.bf16.gmra.mrb[0].mxu0 %v287
    %v339 = vpop.f32.mrb[0].mxu0
    %v340 = vadd.f32 %v172, %v339
    %v341 = vpop.f32.mrb[0].mxu0
    %v342 = vadd.f32 %v174, %v341
    %v343 = vpop.f32.mrb[0].mxu0
    %v344 = vpop.f32.mrb[0].mxu0
    %345 = vdwg.mxu0
    %346 = vmatprep.subr.bf16.mxu0 %v300
    %347 = vmatpush1.bf16.msra.mxu0 %v297
    %348 = vmatprep.subr.bf16.mxu0 0
    %349 = vmatpush1.bf16.msra.mxu0 0
    %350 = vmatprep.subr.bf16.mxu0 0
    %351 = vmatpush1.bf16.msra.mxu0 0
    %352 = vmatprep.subr.bf16.mxu0 0
    %353 = vmatpush1.bf16.msra.mxu0 0
    %354 = vmatprep.subr.bf16.mxu0 0
    %355 = vmatpush1.bf16.msra.mxu0 0
    %356 = vmatprep.subr.bf16.mxu0 0
    %357 = vmatpush1.bf16.msra.mxu0 0
    %358 = vmatprep.subr.bf16.mxu0 0
    %359 = vmatpush1.bf16.msra.mxu0 0
    %360 = vmatprep.subr.bf16.mxu0 0
    %361 = vmatpush1.bf16.msra.mxu0 0
    %362 = vmatprep.subr.bf16.mxu0 0
    %363 = vmatpush1.bf16.msra.mxu0 0
    %364 = vmatprep.subr.bf16.mxu0 0
    %365 = vmatpush1.bf16.msra.mxu0 0
    %366 = vmatprep.subr.bf16.mxu0 0
    %367 = vmatpush1.bf16.msra.mxu0 0
    %368 = vmatprep.subr.bf16.mxu0 0
    %369 = vmatpush1.bf16.msra.mxu0 0
    %370 = vmatprep.subr.bf16.mxu0 0
    %371 = vmatpush1.bf16.msra.mxu0 0
    %372 = vmatprep.subr.bf16.mxu0 0
    %373 = vmatpush1.bf16.msra.mxu0 0
    %374 = vmatprep.subr.bf16.mxu0 0
    %375 = vmatpush1.bf16.msra.mxu0 0
    %376 = vmatprep.subr.bf16.mxu0 0
    %377 = vmatpush1.bf16.msra.mxu0 0
    %378 = vmatprep.mubr.bf16.mxu0 0
    %379 = vmatmul.mubr.bf16.gmra.mrb[0].mxu0 %v287
    %v380 = vpop.f32.mrb[0].mxu0
    %v381 = vadd.f32 %v213, %v380
    %v382 = vpop.f32.mrb[0].mxu0
    %v383 = vadd.f32 %v215, %v382
    %v384 = vpop.f32.mrb[0].mxu0
    %v385 = vpop.f32.mrb[0].mxu0
    %386 = vdwg.mxu0
    %387 = vmatprep.subr.bf16.mxu0 0
    %388 = vmatpush1.bf16.msra.mxu0 %v303
    %389 = vmatprep.subr.bf16.mxu0 0
    %390 = vmatpush1.bf16.msra.mxu0 0
    %391 = vmatprep.subr.bf16.mxu0 0
    %392 = vmatpush1.bf16.msra.mxu0 0
    %393 = vmatprep.subr.bf16.mxu0 0
    %394 = vmatpush1.bf16.msra.mxu0 0
    %395 = vmatprep.subr.bf16.mxu0 0
    %396 = vmatpush1.bf16.msra.mxu0 0
    %397 = vmatprep.subr.bf16.mxu0 0
    %398 = vmatpush1.bf16.msra.mxu0 0
    %399 = vmatprep.subr.bf16.mxu0 0
    %400 = vmatpush1.bf16.msra.mxu0 0
    %401 = vmatprep.subr.bf16.mxu0 0
    %402 = vmatpush1.bf16.msra.mxu0 0
    %403 = vmatprep.subr.bf16.mxu0 0
    %404 = vmatpush1.bf16.msra.mxu0 0
    %405 = vmatprep.subr.bf16.mxu0 0
    %406 = vmatpush1.bf16.msra.mxu0 0
    %407 = vmatprep.subr.bf16.mxu0 0
    %408 = vmatpush1.bf16.msra.mxu0 0
    %409 = vmatprep.subr.bf16.mxu0 0
    %410 = vmatpush1.bf16.msra.mxu0 0
    %411 = vmatprep.subr.bf16.mxu0 0
    %412 = vmatpush1.bf16.msra.mxu0 0
    %413 = vmatprep.subr.bf16.mxu0 0
    %414 = vmatpush1.bf16.msra.mxu0 0
    %415 = vmatprep.subr.bf16.mxu0 0
    %416 = vmatpush1.bf16.msra.mxu0 0
    %417 = vmatprep.subr.bf16.mxu0 0
    %418 = vmatpush1.bf16.msra.mxu0 0
    %419 = vmatprep.mubr.bf16.mxu0 0
    %420 = vmatmul.mubr.bf16.gmra.mrb[0].mxu0 %v287
    %v421 = vpop.f32.mrb[0].mxu0
    %v422 = vadd.f32 %v254, %v421
    %v423 = vpop.f32.mrb[0].mxu0
    %v424 = vpop.f32.mrb[0].mxu0
    %v425 = vpop.f32.mrb[0].mxu0
    %426 = vdwg.mxu0
    %v427 = vld [vmem:[%s5] sm:$0x1f]
    %v429 = vlaneseq
    %v430 = vshrl.u32 %v429, 7
    %v431 = vsub.s32 0, %v430
    %v432 = vrot.slane %v427, %v431
    %v433 = vlaneseq
    %v434 = vshrl.u32 %v433, 7
    %v435 = vsub.s32 1, %v434
    %v436 = vrot.slane %v427, %v435
    %v437 = vlaneseq
    %v438 = vshrl.u32 %v437, 7
    %v439 = vsub.s32 2, %v438
    %v440 = vrot.slane %v427, %v439
    %v441 = vlaneseq
    %v442 = vshrl.u32 %v441, 7
    %v443 = vsub.s32 3, %v442
    %v444 = vrot.slane %v427, %v443
    %v445 = vlaneseq
    %v446 = vshrl.u32 %v445, 7
    %v447 = vsub.s32 4, %v446
    %v448 = vrot.slane %v427, %v447
    %v454 = vadd.f32 %v340, %v432
    %v455 = vadd.f32 %v342, %v436
    %v456 = vadd.f32 %v381, %v440
    %v457 = vadd.f32 %v383, %v444
    %v458 = vadd.f32 %v422, %v448
    %vm459 = vcmp.gt.f32.partialorder %v454, 0.0
    %vm460 = vcmp.gt.f32.partialorder %v455, 0.0
    %vm461 = vcmp.gt.f32.partialorder %v456, 0.0
    %vm462 = vcmp.gt.f32.partialorder %v457, 0.0
    %vm463 = vcmp.gt.f32.partialorder %v458, 0.0
    %v464 = vstv %s61
    %v465 = vmul.f32 %v464, %v454
    %v466 = vmul.f32 %v464, %v455
    %v467 = vmul.f32 %v464, %v456
    %v468 = vmul.f32 %v464, %v457
    %v469 = vmul.f32 %v464, %v458
    %v470 = vsel %vm459, %v454, %v465
    %v471 = vsel %vm460, %v455, %v466
    %v472 = vsel %vm461, %v456, %v467
    %v473 = vsel %vm462, %v457, %v468
    %v474 = vsel %vm463, %v458, %v469
    %v475 = vpack.c.bf16 %v470, %v470
    %v476 = vpack.c.bf16 %v471, %v471
    %v477 = vpack.c.bf16 %v472, %v472
    %v478 = vpack.c.bf16 %v473, %v473
    %v479 = vpack.c.bf16 %v474, %v474
    %v480 = vld [vmem:[#allocation7] sm:$0xff]
    %v481 = vld [vmem:[#allocation7 + $0x8] sm:$0xff]
    %v482 = vld [vmem:[#allocation7 + $0x10] sm:$0xff]
    %v483 = vld [vmem:[#allocation7 + $0x18] sm:$0xff]
    %v484 = vld [vmem:[#allocation7 + $0x20] sm:$0xff]
    %v485 = vld [vmem:[#allocation7 + $0x28] sm:$0xff]
    %v486 = vld [vmem:[#allocation7 + $0x30] sm:$0xff]
    %v487 = vld [vmem:[#allocation7 + $0x38] sm:$0xff]
    %v488 = vld [vmem:[#allocation7 + $0x40] sm:$0xff]
    %v489 = vld [vmem:[#allocation7 + $0x48] sm:$0xff]
    %v490 = vld [vmem:[#allocation7 + $0x50] sm:$0xff]
    %v491 = vld [vmem:[#allocation7 + $0x58] sm:$0xff]
    %v492 = vld [vmem:[#allocation7 + $0x60] sm:$0xff]
    %v493 = vld [vmem:[#allocation7 + $0x68] sm:$0xff]
    %v494 = vld [vmem:[#allocation7 + $0x70] sm:$0xff]
    %v495 = vld [vmem:[#allocation7 + $0x78] sm:$0xff]
    %v496 = vld [vmem:[#allocation7 + $0x80] sm:$0xff]
    %v497 = vld [vmem:[#allocation7 + $0x88] sm:$0xff]
    %v498 = vld [vmem:[#allocation7 + $0x90] sm:$0xff]
    %v499 = vld [vmem:[#allocation7 + $0x98] sm:$0xff]
    %v500 = vld [vmem:[#allocation7 + $0xa0] sm:$0xff]
    %v501 = vld [vmem:[#allocation7 + $0xa8] sm:$0xff]
    %v502 = vld [vmem:[#allocation7 + $0xb0] sm:$0xff]
    %v503 = vld [vmem:[#allocation7 + $0xb8] sm:$0xff]
    %v504 = vld [vmem:[#allocation7 + $0xc0] sm:$0xff]
    %v505 = vld [vmem:[#allocation7 + $0xc8] sm:$0xff]
    %v506 = vld [vmem:[#allocation7 + $0xd0] sm:$0xff]
    %v507 = vld [vmem:[#allocation7 + $0xd8] sm:$0xff]
    %v508 = vld [vmem:[#allocation7 + $0xe0] sm:$0xff]
    %v509 = vld [vmem:[#allocation7 + $0xe8] sm:$0xff]
    %v510 = vld [vmem:[#allocation7 + $0xf0] sm:$0xff]
    %v511 = vld [vmem:[#allocation7 + $0xf8] sm:$0xff]
    %v512 = vld [vmem:[#allocation7 + $0x100] sm:$0xff]
    %v513 = vld [vmem:[#allocation7 + $0x108] sm:$0xff]
    %v514 = vld [vmem:[#allocation7 + $0x110] sm:$0xff]
    %v515 = vld [vmem:[#allocation7 + $0x118] sm:$0xff]
    %v516 = vld [vmem:[#allocation7 + $0x120] sm:$0xff]
    %v517 = vld [vmem:[#allocation7 + $0x128] sm:$0xff]
    %v518 = vld [vmem:[#allocation7 + $0x130] sm:$0xff]
    %v519 = vld [vmem:[#allocation7 + $0x138] sm:$0xff]
    %v520 = vld [vmem:[#allocation7 + $0x140] sm:$0xff]
    %v521 = vld [vmem:[#allocation7 + $0x148] sm:$0xff]
    %v522 = vld [vmem:[#allocation7 + $0x150] sm:$0xff]
    %v523 = vld [vmem:[#allocation7 + $0x158] sm:$0xff]
    %v524 = vld [vmem:[#allocation7 + $0x160] sm:$0xff]
    %v525 = vld [vmem:[#allocation7 + $0x168] sm:$0xff]
    %v526 = vld [vmem:[#allocation7 + $0x170] sm:$0xff]
    %v527 = vld [vmem:[#allocation7 + $0x178] sm:$0xff]
    %v528 = vld [vmem:[#allocation7 + $0x180] sm:$0xff]
    %v529 = vld [vmem:[#allocation7 + $0x188] sm:$0xff]
    %v530 = vld [vmem:[#allocation7 + $0x190] sm:$0xff]
    %v531 = vld [vmem:[#allocation7 + $0x198] sm:$0xff]
    %v532 = vld [vmem:[#allocation7 + $0x1a0] sm:$0xff]
    %v533 = vld [vmem:[#allocation7 + $0x1a8] sm:$0xff]
    %v534 = vld [vmem:[#allocation7 + $0x1b0] sm:$0xff]
    %v535 = vld [vmem:[#allocation7 + $0x1b8] sm:$0xff]
    %v536 = vld [vmem:[#allocation7 + $0x1c0] sm:$0xff]
    %v537 = vld [vmem:[#allocation7 + $0x1c8] sm:$0xff]
    %v538 = vld [vmem:[#allocation7 + $0x1d0] sm:$0xff]
    %v539 = vld [vmem:[#allocation7 + $0x1d8] sm:$0xff]
    %v540 = vld [vmem:[#allocation7 + $0x1e0] sm:$0xff]
    %v541 = vld [vmem:[#allocation7 + $0x1e8] sm:$0xff]
    %v542 = vld [vmem:[#allocation7 + $0x1f0] sm:$0xff]
    %v543 = vld [vmem:[#allocation7 + $0x1f8] sm:$0xff]
    %v544 = vld [vmem:[#allocation7 + $0x200] sm:$0xff]
    %v545 = vld [vmem:[#allocation7 + $0x208] sm:$0xff]
    %v546 = vld [vmem:[#allocation7 + $0x210] sm:$0xff]
    %v547 = vld [vmem:[#allocation7 + $0x218] sm:$0xff]
    %v548 = vld [vmem:[#allocation7 + $0x220] sm:$0xff]
    %v549 = vld [vmem:[#allocation7 + $0x228] sm:$0xff]
    %v550 = vld [vmem:[#allocation7 + $0x230] sm:$0xff]
    %v551 = vld [vmem:[#allocation7 + $0x238] sm:$0xff]
    %v552 = vld [vmem:[#allocation7 + $0x240] sm:$0xff]
    %v553 = vld [vmem:[#allocation7 + $0x248] sm:$0xff]
    %v554 = vld [vmem:[#allocation7 + $0x250] sm:$0xff]
    %v555 = vld [vmem:[#allocation7 + $0x258] sm:$0xff]
    %v556 = vld [vmem:[#allocation7 + $0x260] sm:$0xff]
    %v557 = vld [vmem:[#allocation7 + $0x268] sm:$0xff]
    %v558 = vld [vmem:[#allocation7 + $0x270] sm:$0xff]
    %v559 = vld [vmem:[#allocation7 + $0x278] sm:$0xff]
    %v560 = vld [vmem:[#allocation7 + $0x280] sm:$0xff]
    %v561 = vld [vmem:[#allocation7 + $0x288] sm:$0xff]
    %v562 = vld [vmem:[#allocation7 + $0x290] sm:$0xff]
    %v563 = vld [vmem:[#allocation7 + $0x298] sm:$0xff]
    %v564 = vld [vmem:[#allocation7 + $0x2a0] sm:$0xff]
    %v565 = vld [vmem:[#allocation7 + $0x2a8] sm:$0xff]
    %v566 = vld [vmem:[#allocation7 + $0x2b0] sm:$0xff]
    %v567 = vld [vmem:[#allocation7 + $0x2b8] sm:$0xff]
    %v568 = vld [vmem:[#allocation7 + $0x2c0] sm:$0xff]
    %v569 = vld [vmem:[#allocation7 + $0x2c8] sm:$0xff]
    %v570 = vld [vmem:[#allocation7 + $0x2d0] sm:$0xff]
    %v571 = vld [vmem:[#allocation7 + $0x2d8] sm:$0xff]
    %v572 = vld [vmem:[#allocation7 + $0x2e0] sm:$0xff]
    %v573 = vld [vmem:[#allocation7 + $0x2e8] sm:$0xff]
    %v574 = vld [vmem:[#allocation7 + $0x2f0] sm:$0xff]
    %v575 = vld [vmem:[#allocation7 + $0x2f8] sm:$0xff]
    %v576 = vld [vmem:[#allocation7 + $0x300] sm:$0xff]
    %v577 = vld [vmem:[#allocation7 + $0x308] sm:$0xff]
    %v578 = vld [vmem:[#allocation7 + $0x310] sm:$0xff]
    %v579 = vld [vmem:[#allocation7 + $0x318] sm:$0xff]
    %v580 = vld [vmem:[#allocation7 + $0x320] sm:$0xff]
    %v581 = vld [vmem:[#allocation7 + $0x328] sm:$0xff]
    %v582 = vld [vmem:[#allocation7 + $0x330] sm:$0xff]
    %v583 = vld [vmem:[#allocation7 + $0x338] sm:$0xff]
    %v584 = vld [vmem:[#allocation7 + $0x340] sm:$0xff]
    %v585 = vld [vmem:[#allocation7 + $0x348] sm:$0xff]
    %v586 = vld [vmem:[#allocation7 + $0x350] sm:$0xff]
    %v587 = vld [vmem:[#allocation7 + $0x358] sm:$0xff]
    %v588 = vld [vmem:[#allocation7 + $0x360] sm:$0xff]
    %v589 = vld [vmem:[#allocation7 + $0x368] sm:$0xff]
    %v590 = vld [vmem:[#allocation7 + $0x370] sm:$0xff]
    %v591 = vld [vmem:[#allocation7 + $0x378] sm:$0xff]
    %v592 = vld [vmem:[#allocation7 + $0x380] sm:$0xff]
    %v593 = vld [vmem:[#allocation7 + $0x388] sm:$0xff]
    %v594 = vld [vmem:[#allocation7 + $0x390] sm:$0xff]
    %v595 = vld [vmem:[#allocation7 + $0x398] sm:$0xff]
    %v596 = vld [vmem:[#allocation7 + $0x3a0] sm:$0xff]
    %v597 = vld [vmem:[#allocation7 + $0x3a8] sm:$0xff]
    %v598 = vld [vmem:[#allocation7 + $0x3b0] sm:$0xff]
    %v599 = vld [vmem:[#allocation7 + $0x3b8] sm:$0xff]
    %v600 = vld [vmem:[#allocation7 + $0x3c0] sm:$0xff]
    %v601 = vld [vmem:[#allocation7 + $0x3c8] sm:$0xff]
    %v602 = vld [vmem:[#allocation7 + $0x3d0] sm:$0xff]
    %v603 = vld [vmem:[#allocation7 + $0x3d8] sm:$0xff]
    %v604 = vld [vmem:[#allocation7 + $0x3e0] sm:$0xff]
    %v605 = vld [vmem:[#allocation7 + $0x3e8] sm:$0xff]
    %v606 = vld [vmem:[#allocation7 + $0x3f0] sm:$0xff]
    %v607 = vld [vmem:[#allocation7 + $0x3f8] sm:$0xff]
    %v608 = vld [vmem:[#allocation7 + $0x400] sm:$0xff]
    %v609 = vld [vmem:[#allocation7 + $0x408] sm:$0xff]
    %v610 = vld [vmem:[#allocation7 + $0x410] sm:$0xff]
    %v611 = vld [vmem:[#allocation7 + $0x418] sm:$0xff]
    %v612 = vld [vmem:[#allocation7 + $0x420] sm:$0xff]
    %v613 = vld [vmem:[#allocation7 + $0x428] sm:$0xff]
    %v614 = vld [vmem:[#allocation7 + $0x430] sm:$0xff]
    %v615 = vld [vmem:[#allocation7 + $0x438] sm:$0xff]
    %v616 = vld [vmem:[%s7] sm:$0xf]
    %v618 = vlaneseq
    %v619 = vshrl.u32 %v618, 7
    %v620 = vsub.s32 0, %v619
    %v621 = vrot.slane %v616, %v620
    %v622 = vlaneseq
    %v623 = vshrl.u32 %v622, 7
    %v624 = vsub.s32 1, %v623
    %v625 = vrot.slane %v616, %v624
    %v626 = vlaneseq
    %v627 = vshrl.u32 %v626, 7
    %v628 = vsub.s32 2, %v627
    %v629 = vrot.slane %v616, %v628
    %v630 = vlaneseq
    %v631 = vshrl.u32 %v630, 7
    %v632 = vsub.s32 3, %v631
    %v633 = vrot.slane %v616, %v632
    %v774 = vunpack.c.l.b16 %v480
    %v775 = vunpack.c.h.b16 %v480
    %v776 = vunpack.c.l.b16 %v481
    %v777 = vunpack.c.h.b16 %v481
    %v778 = vunpack.c.l.b16 %v482
    %v779 = vunpack.c.h.b16 %v482
    %v780 = vunpack.c.l.b16 %v483
    %v781 = vunpack.c.h.b16 %v483
    %v782 = vunpack.c.l.b16 %v484
    %v783 = vunpack.c.h.b16 %v484
    %v784 = vunpack.c.l.b16 %v485
    %v785 = vunpack.c.h.b16 %v485
    %v786 = vunpack.c.l.b16 %v486
    %v787 = vunpack.c.h.b16 %v486
    %v788 = vunpack.c.l.b16 %v487
    %v789 = vunpack.c.h.b16 %v487
    %v790 = vunpack.c.l.b16 %v488
    %v791 = vunpack.c.h.b16 %v488
    %v792 = vunpack.c.l.b16 %v489
    %v793 = vunpack.c.h.b16 %v489
    %v794 = vunpack.c.l.b16 %v490
    %v795 = vunpack.c.h.b16 %v490
    %v796 = vunpack.c.l.b16 %v491
    %v797 = vunpack.c.h.b16 %v491
    %v798 = vunpack.c.l.b16 %v492
    %v799 = vunpack.c.h.b16 %v492
    %v800 = vunpack.c.l.b16 %v493
    %v801 = vunpack.c.h.b16 %v493
    %v802 = vunpack.c.l.b16 %v494
    %v803 = vunpack.c.h.b16 %v494
    %v804 = vunpack.c.l.b16 %v495
    %v805 = vunpack.c.h.b16 %v495
    %v806 = vunpack.c.l.b16 %v496
    %v807 = vunpack.c.h.b16 %v496
    %v808 = vunpack.c.l.b16 %v497
    %v809 = vunpack.c.h.b16 %v497
    %v810 = vunpack.c.l.b16 %v498
    %v811 = vunpack.c.h.b16 %v498
    %v812 = vunpack.c.l.b16 %v499
    %v813 = vunpack.c.h.b16 %v499
    %v814 = vunpack.c.l.b16 %v500
    %v815 = vunpack.c.h.b16 %v500
    %v816 = vunpack.c.l.b16 %v501
    %v817 = vunpack.c.h.b16 %v501
    %v818 = vunpack.c.l.b16 %v502
    %v819 = vunpack.c.h.b16 %v502
    %v820 = vunpack.c.l.b16 %v503
    %v821 = vunpack.c.h.b16 %v503
    %v822 = vunpack.c.l.b16 %v504
    %v823 = vunpack.c.h.b16 %v504
    %v824 = vunpack.c.l.b16 %v505
    %v825 = vunpack.c.h.b16 %v505
    %v826 = vunpack.c.l.b16 %v506
    %v827 = vunpack.c.h.b16 %v506
    %v828 = vunpack.c.l.b16 %v507
    %v829 = vunpack.c.h.b16 %v507
    %v830 = vunpack.c.l.b16 %v508
    %v831 = vunpack.c.h.b16 %v508
    %v832 = vunpack.c.l.b16 %v509
    %v833 = vunpack.c.h.b16 %v509
    %v834 = vunpack.c.l.b16 %v510
    %v835 = vunpack.c.h.b16 %v510
    %v836 = vunpack.c.l.b16 %v511
    %v837 = vunpack.c.h.b16 %v511
    %v838 = vunpack.c.l.b16 %v512
    %v839 = vunpack.c.h.b16 %v512
    %v840 = vunpack.c.l.b16 %v513
    %v841 = vunpack.c.h.b16 %v513
    %v842 = vunpack.c.l.b16 %v514
    %v843 = vunpack.c.h.b16 %v514
    %v844 = vunpack.c.l.b16 %v515
    %v845 = vunpack.c.h.b16 %v515
    %v846 = vunpack.c.l.b16 %v516
    %v847 = vunpack.c.h.b16 %v516
    %v848 = vunpack.c.l.b16 %v517
    %v849 = vunpack.c.h.b16 %v517
    %v850 = vunpack.c.l.b16 %v518
    %v851 = vunpack.c.h.b16 %v518
    %v852 = vunpack.c.l.b16 %v519
    %v853 = vunpack.c.h.b16 %v519
    %v854 = vunpack.c.l.b16 %v520
    %v855 = vunpack.c.h.b16 %v520
    %v856 = vunpack.c.l.b16 %v521
    %v857 = vunpack.c.h.b16 %v521
    %v858 = vunpack.c.l.b16 %v522
    %v859 = vunpack.c.h.b16 %v522
    %v860 = vunpack.c.l.b16 %v523
    %v861 = vunpack.c.h.b16 %v523
    %v862 = vunpack.c.l.b16 %v524
    %v863 = vunpack.c.h.b16 %v524
    %v864 = vunpack.c.l.b16 %v525
    %v865 = vunpack.c.h.b16 %v525
    %v866 = vunpack.c.l.b16 %v526
    %v867 = vunpack.c.h.b16 %v526
    %v868 = vunpack.c.l.b16 %v527
    %v869 = vunpack.c.h.b16 %v527
    %v870 = vunpack.c.l.b16 %v528
    %v871 = vunpack.c.h.b16 %v528
    %v872 = vunpack.c.l.b16 %v529
    %v873 = vunpack.c.h.b16 %v529
    %v874 = vunpack.c.l.b16 %v530
    %v875 = vunpack.c.h.b16 %v530
    %v876 = vunpack.c.l.b16 %v531
    %v877 = vunpack.c.h.b16 %v531
    %v878 = vunpack.c.l.b16 %v532
    %v879 = vunpack.c.h.b16 %v532
    %v880 = vunpack.c.l.b16 %v533
    %v881 = vunpack.c.h.b16 %v533
    %v882 = vunpack.c.l.b16 %v534
    %v883 = vunpack.c.h.b16 %v534
    %v884 = vunpack.c.l.b16 %v535
    %v885 = vunpack.c.h.b16 %v535
    %v886 = vunpack.c.l.b16 %v536
    %v887 = vunpack.c.h.b16 %v536
    %v888 = vunpack.c.l.b16 %v537
    %v889 = vunpack.c.h.b16 %v537
    %v890 = vunpack.c.l.b16 %v538
    %v891 = vunpack.c.h.b16 %v538
    %v892 = vunpack.c.l.b16 %v539
    %v893 = vunpack.c.h.b16 %v539
    %v894 = vunpack.c.l.b16 %v540
    %v895 = vunpack.c.h.b16 %v540
    %v896 = vunpack.c.l.b16 %v541
    %v897 = vunpack.c.h.b16 %v541
    %v898 = vunpack.c.l.b16 %v542
    %v899 = vunpack.c.h.b16 %v542
    %v900 = vunpack.c.l.b16 %v543
    %v901 = vunpack.c.h.b16 %v543
    %v902 = vunpack.c.l.b16 %v544
    %v903 = vunpack.c.h.b16 %v544
    %v904 = vunpack.c.l.b16 %v545
    %v905 = vunpack.c.h.b16 %v545
    %v906 = vunpack.c.l.b16 %v546
    %v907 = vunpack.c.h.b16 %v546
    %v908 = vunpack.c.l.b16 %v547
    %v909 = vunpack.c.h.b16 %v547
    %v910 = vunpack.c.l.b16 %v548
    %v911 = vunpack.c.h.b16 %v548
    %v912 = vunpack.c.l.b16 %v549
    %v913 = vunpack.c.h.b16 %v549
    %v914 = vunpack.c.l.b16 %v550
    %v915 = vunpack.c.h.b16 %v550
    %v916 = vunpack.c.l.b16 %v551
    %v917 = vunpack.c.h.b16 %v551
    %v918 = vunpack.c.l.b16 %v552
    %v919 = vunpack.c.h.b16 %v552
    %v920 = vunpack.c.l.b16 %v553
    %v921 = vunpack.c.h.b16 %v553
    %v922 = vunpack.c.l.b16 %v554
    %v923 = vunpack.c.h.b16 %v554
    %v924 = vunpack.c.l.b16 %v555
    %v925 = vunpack.c.h.b16 %v555
    %v926 = vunpack.c.l.b16 %v556
    %v927 = vunpack.c.h.b16 %v556
    %v928 = vunpack.c.l.b16 %v557
    %v929 = vunpack.c.h.b16 %v557
    %v930 = vunpack.c.l.b16 %v558
    %v931 = vunpack.c.h.b16 %v558
    %v932 = vunpack.c.l.b16 %v559
    %v933 = vunpack.c.h.b16 %v559
    %v934 = vunpack.c.l.b16 %v560
    %v935 = vunpack.c.h.b16 %v560
    %v936 = vunpack.c.l.b16 %v561
    %v937 = vunpack.c.h.b16 %v561
    %v938 = vunpack.c.l.b16 %v562
    %v939 = vunpack.c.h.b16 %v562
    %v940 = vunpack.c.l.b16 %v563
    %v941 = vunpack.c.h.b16 %v563
    %v942 = vunpack.c.l.b16 %v564
    %v943 = vunpack.c.h.b16 %v564
    %v944 = vunpack.c.l.b16 %v565
    %v945 = vunpack.c.h.b16 %v565
    %v946 = vunpack.c.l.b16 %v566
    %v947 = vunpack.c.h.b16 %v566
    %v948 = vunpack.c.l.b16 %v567
    %v949 = vunpack.c.h.b16 %v567
    %v950 = vunpack.c.l.b16 %v568
    %v951 = vunpack.c.h.b16 %v568
    %v952 = vunpack.c.l.b16 %v569
    %v953 = vunpack.c.h.b16 %v569
    %v954 = vunpack.c.l.b16 %v570
    %v955 = vunpack.c.h.b16 %v570
    %v956 = vunpack.c.l.b16 %v571
    %v957 = vunpack.c.h.b16 %v571
    %v958 = vunpack.c.l.b16 %v572
    %v959 = vunpack.c.h.b16 %v572
    %v960 = vunpack.c.l.b16 %v573
    %v961 = vunpack.c.h.b16 %v573
    %v962 = vunpack.c.l.b16 %v574
    %v963 = vunpack.c.h.b16 %v574
    %v964 = vunpack.c.l.b16 %v575
    %v965 = vunpack.c.h.b16 %v575
    %v966 = vunpack.c.l.b16 %v576
    %v967 = vunpack.c.h.b16 %v576
    %v968 = vunpack.c.l.b16 %v577
    %v969 = vunpack.c.h.b16 %v577
    %v970 = vunpack.c.l.b16 %v578
    %v971 = vunpack.c.h.b16 %v578
    %v972 = vunpack.c.l.b16 %v579
    %v973 = vunpack.c.h.b16 %v579
    %v974 = vunpack.c.l.b16 %v580
    %v975 = vunpack.c.h.b16 %v580
    %v976 = vunpack.c.l.b16 %v581
    %v977 = vunpack.c.h.b16 %v581
    %v978 = vunpack.c.l.b16 %v582
    %v979 = vunpack.c.h.b16 %v582
    %v980 = vunpack.c.l.b16 %v583
    %v981 = vunpack.c.h.b16 %v583
    %v982 = vunpack.c.l.b16 %v584
    %v983 = vunpack.c.h.b16 %v584
    %v984 = vunpack.c.l.b16 %v585
    %v985 = vunpack.c.h.b16 %v585
    %v986 = vunpack.c.l.b16 %v586
    %v987 = vunpack.c.h.b16 %v586
    %v988 = vunpack.c.l.b16 %v587
    %v989 = vunpack.c.h.b16 %v587
    %v990 = vunpack.c.l.b16 %v588
    %v991 = vunpack.c.h.b16 %v588
    %v992 = vunpack.c.l.b16 %v589
    %v993 = vunpack.c.h.b16 %v589
    %v994 = vunpack.c.l.b16 %v590
    %v995 = vunpack.c.h.b16 %v590
    %v996 = vunpack.c.l.b16 %v591
    %v997 = vunpack.c.h.b16 %v591
    %v998 = vunpack.c.l.b16 %v592
    %v999 = vunpack.c.h.b16 %v592
    %v1000 = vunpack.c.l.b16 %v593
    %v1001 = vunpack.c.h.b16 %v593
    %v1002 = vunpack.c.l.b16 %v594
    %v1003 = vunpack.c.h.b16 %v594
    %v1004 = vunpack.c.l.b16 %v595
    %v1005 = vunpack.c.h.b16 %v595
    %v1006 = vunpack.c.l.b16 %v596
    %v1007 = vunpack.c.h.b16 %v596
    %v1008 = vunpack.c.l.b16 %v597
    %v1009 = vunpack.c.h.b16 %v597
    %v1010 = vunpack.c.l.b16 %v598
    %v1011 = vunpack.c.h.b16 %v598
    %v1012 = vunpack.c.l.b16 %v599
    %v1013 = vunpack.c.h.b16 %v599
    %v1014 = vunpack.c.l.b16 %v600
    %v1015 = vunpack.c.h.b16 %v600
    %v1016 = vunpack.c.l.b16 %v601
    %v1017 = vunpack.c.h.b16 %v601
    %v1018 = vunpack.c.l.b16 %v602
    %v1019 = vunpack.c.h.b16 %v602
    %v1020 = vunpack.c.l.b16 %v603
    %v1021 = vunpack.c.h.b16 %v603
    %v1022 = vunpack.c.l.b16 %v604
    %v1023 = vunpack.c.h.b16 %v604
    %v1024 = vunpack.c.l.b16 %v605
    %v1025 = vunpack.c.h.b16 %v605
    %v1026 = vunpack.c.l.b16 %v606
    %v1027 = vunpack.c.h.b16 %v606
    %v1028 = vunpack.c.l.b16 %v607
    %v1029 = vunpack.c.h.b16 %v607
    %v1030 = vunpack.c.l.b16 %v608
    %v1031 = vunpack.c.h.b16 %v608
    %v1032 = vunpack.c.l.b16 %v609
    %v1033 = vunpack.c.h.b16 %v609
    %v1034 = vunpack.c.l.b16 %v610
    %v1035 = vunpack.c.h.b16 %v610
    %v1036 = vunpack.c.l.b16 %v611
    %v1037 = vunpack.c.h.b16 %v611
    %v1038 = vunpack.c.l.b16 %v612
    %v1039 = vunpack.c.h.b16 %v612
    %v1040 = vunpack.c.l.b16 %v613
    %v1041 = vunpack.c.h.b16 %v613
    %v1042 = vunpack.c.l.b16 %v614
    %v1043 = vunpack.c.h.b16 %v614
    %v1044 = vunpack.c.l.b16 %v615
    %v1045 = vunpack.c.h.b16 %v615
    %v1046 = vpack.c.b16 %v778, %v774
    %v1047 = vpack.c.b16 %v779, %v775
    %v1048 = vpack.c.b16 %v780, %v776
    %v1049 = vpack.c.b16 %v781, %v777
    %v1050 = vpack.c.b16 %v786, %v782
    %v1051 = vpack.c.b16 %v787, %v783
    %v1052 = vpack.c.b16 %v788, %v784
    %v1053 = vpack.c.b16 %v789, %v785
    %v1054 = vpack.c.b16 %v794, %v790
    %v1055 = vpack.c.b16 %v795, %v791
    %v1056 = vpack.c.b16 %v796, %v792
    %v1057 = vpack.c.b16 %v797, %v793
    %v1058 = vpack.c.b16 %v802, %v798
    %v1059 = vpack.c.b16 %v803, %v799
    %v1060 = vpack.c.b16 %v804, %v800
    %v1061 = vpack.c.b16 %v805, %v801
    %v1062 = vpack.c.b16 %v810, %v806
    %v1063 = vpack.c.b16 %v811, %v807
    %v1064 = vpack.c.b16 %v812, %v808
    %v1065 = vpack.c.b16 %v813, %v809
    %v1066 = vpack.c.b16 %v818, %v814
    %v1067 = vpack.c.b16 %v819, %v815
    %v1068 = vpack.c.b16 %v820, %v816
    %v1069 = vpack.c.b16 %v821, %v817
    %v1070 = vpack.c.b16 %v826, %v822
    %v1071 = vpack.c.b16 %v827, %v823
    %v1072 = vpack.c.b16 %v828, %v824
    %v1073 = vpack.c.b16 %v829, %v825
    %v1074 = vpack.c.b16 %v834, %v830
    %v1075 = vpack.c.b16 %v835, %v831
    %v1076 = vpack.c.b16 %v836, %v832
    %v1077 = vpack.c.b16 %v837, %v833
    %v1078 = vpack.c.b16 %v842, %v838
    %v1079 = vpack.c.b16 %v843, %v839
    %v1080 = vpack.c.b16 %v844, %v840
    %v1081 = vpack.c.b16 %v845, %v841
    %v1082 = vpack.c.b16 %v850, %v846
    %v1083 = vpack.c.b16 %v851, %v847
    %v1084 = vpack.c.b16 %v852, %v848
    %v1085 = vpack.c.b16 %v853, %v849
    %v1086 = vpack.c.b16 %v858, %v854
    %v1087 = vpack.c.b16 %v859, %v855
    %v1088 = vpack.c.b16 %v860, %v856
    %v1089 = vpack.c.b16 %v861, %v857
    %v1090 = vpack.c.b16 %v866, %v862
    %v1091 = vpack.c.b16 %v867, %v863
    %v1092 = vpack.c.b16 %v868, %v864
    %v1093 = vpack.c.b16 %v869, %v865
    %v1094 = vpack.c.b16 %v874, %v870
    %v1095 = vpack.c.b16 %v875, %v871
    %v1096 = vpack.c.b16 %v876, %v872
    %v1097 = vpack.c.b16 %v877, %v873
    %v1098 = vpack.c.b16 %v882, %v878
    %v1099 = vpack.c.b16 %v883, %v879
    %v1100 = vpack.c.b16 %v884, %v880
    %v1101 = vpack.c.b16 %v885, %v881
    %v1102 = vpack.c.b16 %v890, %v886
    %v1103 = vpack.c.b16 %v891, %v887
    %v1104 = vpack.c.b16 %v892, %v888
    %v1105 = vpack.c.b16 %v893, %v889
    %v1106 = vpack.c.b16 %v898, %v894
    %v1107 = vpack.c.b16 %v899, %v895
    %v1108 = vpack.c.b16 %v900, %v896
    %v1109 = vpack.c.b16 %v901, %v897
    %v1110 = vpack.c.b16 %v906, %v902
    %v1111 = vpack.c.b16 %v907, %v903
    %v1112 = vpack.c.b16 %v908, %v904
    %v1113 = vpack.c.b16 %v909, %v905
    %v1114 = vpack.c.b16 %v914, %v910
    %v1115 = vpack.c.b16 %v915, %v911
    %v1116 = vpack.c.b16 %v916, %v912
    %v1117 = vpack.c.b16 %v917, %v913
    %v1118 = vpack.c.b16 %v922, %v918
    %v1119 = vpack.c.b16 %v923, %v919
    %v1120 = vpack.c.b16 %v924, %v920
    %v1121 = vpack.c.b16 %v925, %v921
    %v1122 = vpack.c.b16 %v930, %v926
    %v1123 = vpack.c.b16 %v931, %v927
    %v1124 = vpack.c.b16 %v932, %v928
    %v1125 = vpack.c.b16 %v933, %v929
    %v1126 = vpack.c.b16 %v938, %v934
    %v1127 = vpack.c.b16 %v939, %v935
    %v1128 = vpack.c.b16 %v940, %v936
    %v1129 = vpack.c.b16 %v941, %v937
    %v1130 = vpack.c.b16 %v946, %v942
    %v1131 = vpack.c.b16 %v947, %v943
    %v1132 = vpack.c.b16 %v948, %v944
    %v1133 = vpack.c.b16 %v949, %v945
    %v1134 = vpack.c.b16 %v954, %v950
    %v1135 = vpack.c.b16 %v955, %v951
    %v1136 = vpack.c.b16 %v956, %v952
    %v1137 = vpack.c.b16 %v957, %v953
    %v1138 = vpack.c.b16 %v962, %v958
    %v1139 = vpack.c.b16 %v963, %v959
    %v1140 = vpack.c.b16 %v964, %v960
    %v1141 = vpack.c.b16 %v965, %v961
    %v1142 = vpack.c.b16 %v970, %v966
    %v1143 = vpack.c.b16 %v971, %v967
    %v1144 = vpack.c.b16 %v972, %v968
    %v1145 = vpack.c.b16 %v973, %v969
    %v1146 = vpack.c.b16 %v978, %v974
    %v1147 = vpack.c.b16 %v979, %v975
    %v1148 = vpack.c.b16 %v980, %v976
    %v1149 = vpack.c.b16 %v981, %v977
    %v1150 = vpack.c.b16 %v986, %v982
    %v1151 = vpack.c.b16 %v987, %v983
    %v1152 = vpack.c.b16 %v988, %v984
    %v1153 = vpack.c.b16 %v989, %v985
    %v1154 = vpack.c.b16 %v994, %v990
    %v1155 = vpack.c.b16 %v995, %v991
    %v1156 = vpack.c.b16 %v996, %v992
    %v1157 = vpack.c.b16 %v997, %v993
    %v1158 = vpack.c.b16 %v1002, %v998
    %v1159 = vpack.c.b16 %v1003, %v999
    %v1160 = vpack.c.b16 %v1004, %v1000
    %v1161 = vpack.c.b16 %v1005, %v1001
    %v1162 = vpack.c.b16 %v1010, %v1006
    %v1163 = vpack.c.b16 %v1011, %v1007
    %v1164 = vpack.c.b16 %v1012, %v1008
    %v1165 = vpack.c.b16 %v1013, %v1009
    %v1166 = vpack.c.b16 %v1018, %v1014
    %v1167 = vpack.c.b16 %v1019, %v1015
    %v1168 = vpack.c.b16 %v1020, %v1016
    %v1169 = vpack.c.b16 %v1021, %v1017
    %v1170 = vpack.c.b16 %v1026, %v1022
    %v1171 = vpack.c.b16 %v1027, %v1023
    %v1172 = vpack.c.b16 %v1028, %v1024
    %v1173 = vpack.c.b16 %v1029, %v1025
    %v1174 = vpack.c.b16 %v1034, %v1030
    %v1175 = vpack.c.b16 %v1035, %v1031
    %v1176 = vpack.c.b16 %v1036, %v1032
    %v1177 = vpack.c.b16 %v1037, %v1033
    %v1178 = vpack.c.b16 %v1042, %v1038
    %v1179 = vpack.c.b16 %v1043, %v1039
    %v1180 = vpack.c.b16 %v1044, %v1040
    %v1181 = vpack.c.b16 %v1045, %v1041
    %v1319 = vsel %vm133, %v479, 0
    %1321 = vmatprep.subr.bf16.mxu0 %v1047
    %1322 = vmatpush1.bf16.msra.mxu0 %v1046
    %1323 = vmatprep.subr.bf16.mxu0 %v1051
    %1324 = vmatpush1.bf16.msra.mxu0 %v1050
    %1325 = vmatprep.subr.bf16.mxu0 %v1055
    %1326 = vmatpush1.bf16.msra.mxu0 %v1054
    %1327 = vmatprep.subr.bf16.mxu0 %v1059
    %1328 = vmatpush1.bf16.msra.mxu0 %v1058
    %1329 = vmatprep.subr.bf16.mxu0 %v1063
    %1330 = vmatpush1.bf16.msra.mxu0 %v1062
    %1331 = vmatprep.subr.bf16.mxu0 %v1067
    %1332 = vmatpush1.bf16.msra.mxu0 %v1066
    %1333 = vmatprep.subr.bf16.mxu0 %v1071
    %1334 = vmatpush1.bf16.msra.mxu0 %v1070
    %1335 = vmatprep.subr.bf16.mxu0 %v1075
    %1336 = vmatpush1.bf16.msra.mxu0 %v1074
    %1337 = vmatprep.subr.bf16.mxu0 %v1079
    %1338 = vmatpush1.bf16.msra.mxu0 %v1078
    %1339 = vmatprep.subr.bf16.mxu0 %v1083
    %1340 = vmatpush1.bf16.msra.mxu0 %v1082
    %1341 = vmatprep.subr.bf16.mxu0 %v1087
    %1342 = vmatpush1.bf16.msra.mxu0 %v1086
    %1343 = vmatprep.subr.bf16.mxu0 %v1091
    %1344 = vmatpush1.bf16.msra.mxu0 %v1090
    %1345 = vmatprep.subr.bf16.mxu0 %v1095
    %1346 = vmatpush1.bf16.msra.mxu0 %v1094
    %1347 = vmatprep.subr.bf16.mxu0 %v1099
    %1348 = vmatpush1.bf16.msra.mxu0 %v1098
    %1349 = vmatprep.subr.bf16.mxu0 %v1103
    %1350 = vmatpush1.bf16.msra.mxu0 %v1102
    %1351 = vmatprep.subr.bf16.mxu0 %v1107
    %1352 = vmatpush1.bf16.msra.mxu0 %v1106
    %1353 = vmatprep.mubr.bf16.mxu0 %v476
    %1354 = vmatmul.mubr.bf16.gmra.mrb[0].mxu0 %v475
    %v1355 = vpop.f32.mrb[0].mxu0
    %v1356 = vadd.f32 %v621, %v1355
    %v1357 = vpop.f32.mrb[0].mxu0
    %v1358 = vadd.f32 %v625, %v1357
    %v1359 = vpop.f32.mrb[0].mxu0
    %v1360 = vpop.f32.mrb[0].mxu0
    %1361 = vdwg.mxu0
    %1362 = vmatprep.subr.bf16.mxu0 %v1111
    %1363 = vmatpush1.bf16.msra.mxu0 %v1110
    %1364 = vmatprep.subr.bf16.mxu0 %v1115
    %1365 = vmatpush1.bf16.msra.mxu0 %v1114
    %1366 = vmatprep.subr.bf16.mxu0 %v1119
    %1367 = vmatpush1.bf16.msra.mxu0 %v1118
    %1368 = vmatprep.subr.bf16.mxu0 %v1123
    %1369 = vmatpush1.bf16.msra.mxu0 %v1122
    %1370 = vmatprep.subr.bf16.mxu0 %v1127
    %1371 = vmatpush1.bf16.msra.mxu0 %v1126
    %1372 = vmatprep.subr.bf16.mxu0 %v1131
    %1373 = vmatpush1.bf16.msra.mxu0 %v1130
    %1374 = vmatprep.subr.bf16.mxu0 %v1135
    %1375 = vmatpush1.bf16.msra.mxu0 %v1134
    %1376 = vmatprep.subr.bf16.mxu0 %v1139
    %1377 = vmatpush1.bf16.msra.mxu0 %v1138
    %1378 = vmatprep.subr.bf16.mxu0 %v1143
    %1379 = vmatpush1.bf16.msra.mxu0 %v1142
    %1380 = vmatprep.subr.bf16.mxu0 %v1147
    %1381 = vmatpush1.bf16.msra.mxu0 %v1146
    %1382 = vmatprep.subr.bf16.mxu0 %v1151
    %1383 = vmatpush1.bf16.msra.mxu0 %v1150
    %1384 = vmatprep.subr.bf16.mxu0 %v1155
    %1385 = vmatpush1.bf16.msra.mxu0 %v1154
    %1386 = vmatprep.subr.bf16.mxu0 %v1159
    %1387 = vmatpush1.bf16.msra.mxu0 %v1158
    %1388 = vmatprep.subr.bf16.mxu0 %v1163
    %1389 = vmatpush1.bf16.msra.mxu0 %v1162
    %1390 = vmatprep.subr.bf16.mxu0 %v1167
    %1391 = vmatpush1.bf16.msra.mxu0 %v1166
    %1392 = vmatprep.subr.bf16.mxu0 %v1171
    %1393 = vmatpush1.bf16.msra.mxu0 %v1170
    %1394 = vmatprep.mubr.bf16.mxu0 %v478
    %1395 = vmatmul.mubr.bf16.gmra.mrb[0].mxu0 %v477
    %v1396 = vpop.f32.mrb[0].mxu0
    %v1397 = vadd.f32 %v1356, %v1396
    %v1398 = vpop.f32.mrb[0].mxu0
    %v1399 = vadd.f32 %v1358, %v1398
    %v1400 = vpop.f32.mrb[0].mxu0
    %v1401 = vpop.f32.mrb[0].mxu0
    %1402 = vdwg.mxu0
    %1403 = vmatprep.subr.bf16.mxu0 %v1175
    %1404 = vmatpush1.bf16.msra.mxu0 %v1174
    %1405 = vmatprep.subr.bf16.mxu0 %v1179
    %1406 = vmatpush1.bf16.msra.mxu0 %v1178
    %1407 = vmatprep.subr.bf16.mxu0 0
    %1408 = vmatpush1.bf16.msra.mxu0 0
    %1409 = vmatprep.subr.bf16.mxu0 0
    %1410 = vmatpush1.bf16.msra.mxu0 0
    %1411 = vmatprep.subr.bf16.mxu0 0
    %1412 = vmatpush1.bf16.msra.mxu0 0
    %1413 = vmatprep.subr.bf16.mxu0 0
    %1414 = vmatpush1.bf16.msra.mxu0 0
    %1415 = vmatprep.subr.bf16.mxu0 0
    %1416 = vmatpush1.bf16.msra.mxu0 0
    %1417 = vmatprep.subr.bf16.mxu0 0
    %1418 = vmatpush1.bf16.msra.mxu0 0
    %1419 = vmatprep.subr.bf16.mxu0 0
    %1420 = vmatpush1.bf16.msra.mxu0 0
    %1421 = vmatprep.subr.bf16.mxu0 0
    %1422 = vmatpush1.bf16.msra.mxu0 0
    %1423 = vmatprep.subr.bf16.mxu0 0
    %1424 = vmatpush1.bf16.msra.mxu0 0
    %1425 = vmatprep.subr.bf16.mxu0 0
    %1426 = vmatpush1.bf16.msra.mxu0 0
    %1427 = vmatprep.subr.bf16.mxu0 0
    %1428 = vmatpush1.bf16.msra.mxu0 0
    %1429 = vmatprep.subr.bf16.mxu0 0
    %1430 = vmatpush1.bf16.msra.mxu0 0
    %1431 = vmatprep.subr.bf16.mxu0 0
    %1432 = vmatpush1.bf16.msra.mxu0 0
    %1433 = vmatprep.subr.bf16.mxu0 0
    %1434 = vmatpush1.bf16.msra.mxu0 0
    %1435 = vmatprep.mubr.bf16.mxu0 0
    %1436 = vmatmul.mubr.bf16.gmra.mrb[0].mxu0 %v1319
    %v1437 = vpop.f32.mrb[0].mxu0
    %v1438 = vadd.f32 %v1397, %v1437
    %v1439 = vpop.f32.mrb[0].mxu0
    %v1440 = vadd.f32 %v1399, %v1439
    %v1441 = vpop.f32.mrb[0].mxu0
    %v1442 = vpop.f32.mrb[0].mxu0
    %1443 = vdwg.mxu0
    %1444 = vmatprep.subr.bf16.mxu0 %v1049
    %1445 = vmatpush1.bf16.msra.mxu0 %v1048
    %1446 = vmatprep.subr.bf16.mxu0 %v1053
    %1447 = vmatpush1.bf16.msra.mxu0 %v1052
    %1448 = vmatprep.subr.bf16.mxu0 %v1057
    %1449 = vmatpush1.bf16.msra.mxu0 %v1056
    %1450 = vmatprep.subr.bf16.mxu0 %v1061
    %1451 = vmatpush1.bf16.msra.mxu0 %v1060
    %1452 = vmatprep.subr.bf16.mxu0 %v1065
    %1453 = vmatpush1.bf16.msra.mxu0 %v1064
    %1454 = vmatprep.subr.bf16.mxu0 %v1069
    %1455 = vmatpush1.bf16.msra.mxu0 %v1068
    %1456 = vmatprep.subr.bf16.mxu0 %v1073
    %1457 = vmatpush1.bf16.msra.mxu0 %v1072
    %1458 = vmatprep.subr.bf16.mxu0 %v1077
    %1459 = vmatpush1.bf16.msra.mxu0 %v1076
    %1460 = vmatprep.subr.bf16.mxu0 %v1081
    %1461 = vmatpush1.bf16.msra.mxu0 %v1080
    %1462 = vmatprep.subr.bf16.mxu0 %v1085
    %1463 = vmatpush1.bf16.msra.mxu0 %v1084
    %1464 = vmatprep.subr.bf16.mxu0 %v1089
    %1465 = vmatpush1.bf16.msra.mxu0 %v1088
    %1466 = vmatprep.subr.bf16.mxu0 %v1093
    %1467 = vmatpush1.bf16.msra.mxu0 %v1092
    %1468 = vmatprep.subr.bf16.mxu0 %v1097
    %1469 = vmatpush1.bf16.msra.mxu0 %v1096
    %1470 = vmatprep.subr.bf16.mxu0 %v1101
    %1471 = vmatpush1.bf16.msra.mxu0 %v1100
    %1472 = vmatprep.subr.bf16.mxu0 %v1105
    %1473 = vmatpush1.bf16.msra.mxu0 %v1104
    %1474 = vmatprep.subr.bf16.mxu0 %v1109
    %1475 = vmatpush1.bf16.msra.mxu0 %v1108
    %1476 = vmatprep.mubr.bf16.mxu0 %v476
    %1477 = vmatmul.mubr.bf16.gmra.mrb[0].mxu0 %v475
    %v1478 = vpop.f32.mrb[0].mxu0
    %v1479 = vadd.f32 %v629, %v1478
    %v1480 = vpop.f32.mrb[0].mxu0
    %v1481 = vadd.f32 %v633, %v1480
    %v1482 = vpop.f32.mrb[0].mxu0
    %v1483 = vpop.f32.mrb[0].mxu0
    %1484 = vdwg.mxu0
    %1485 = vmatprep.subr.bf16.mxu0 %v1113
    %1486 = vmatpush1.bf16.msra.mxu0 %v1112
    %1487 = vmatprep.subr.bf16.mxu0 %v1117
    %1488 = vmatpush1.bf16.msra.mxu0 %v1116
    %1489 = vmatprep.subr.bf16.mxu0 %v1121
    %1490 = vmatpush1.bf16.msra.mxu0 %v1120
    %1491 = vmatprep.subr.bf16.mxu0 %v1125
    %1492 = vmatpush1.bf16.msra.mxu0 %v1124
    %1493 = vmatprep.subr.bf16.mxu0 %v1129
    %1494 = vmatpush1.bf16.msra.mxu0 %v1128
    %1495 = vmatprep.subr.bf16.mxu0 %v1133
    %1496 = vmatpush1.bf16.msra.mxu0 %v1132
    %1497 = vmatprep.subr.bf16.mxu0 %v1137
    %1498 = vmatpush1.bf16.msra.mxu0 %v1136
    %1499 = vmatprep.subr.bf16.mxu0 %v1141
    %1500 = vmatpush1.bf16.msra.mxu0 %v1140
    %1501 = vmatprep.subr.bf16.mxu0 %v1145
    %1502 = vmatpush1.bf16.msra.mxu0 %v1144
    %1503 = vmatprep.subr.bf16.mxu0 %v1149
    %1504 = vmatpush1.bf16.msra.mxu0 %v1148
    %1505 = vmatprep.subr.bf16.mxu0 %v1153
    %1506 = vmatpush1.bf16.msra.mxu0 %v1152
    %1507 = vmatprep.subr.bf16.mxu0 %v1157
    %1508 = vmatpush1.bf16.msra.mxu0 %v1156
    %1509 = vmatprep.subr.bf16.mxu0 %v1161
    %1510 = vmatpush1.bf16.msra.mxu0 %v1160
    %1511 = vmatprep.subr.bf16.mxu0 %v1165
    %1512 = vmatpush1.bf16.msra.mxu0 %v1164
    %1513 = vmatprep.subr.bf16.mxu0 %v1169
    %1514 = vmatpush1.bf16.msra.mxu0 %v1168
    %1515 = vmatprep.subr.bf16.mxu0 %v1173
    %1516 = vmatpush1.bf16.msra.mxu0 %v1172
    %1517 = vmatprep.mubr.bf16.mxu0 %v478
    %1518 = vmatmul.mubr.bf16.gmra.mrb[0].mxu0 %v477
    %v1519 = vpop.f32.mrb[0].mxu0
    %v1520 = vadd.f32 %v1479, %v1519
    %v1521 = vpop.f32.mrb[0].mxu0
    %v1522 = vadd.f32 %v1481, %v1521
    %v1523 = vpop.f32.mrb[0].mxu0
    %v1524 = vpop.f32.mrb[0].mxu0
    %1525 = vdwg.mxu0
    %1526 = vmatprep.subr.bf16.mxu0 %v1177
    %1527 = vmatpush1.bf16.msra.mxu0 %v1176
    %1528 = vmatprep.subr.bf16.mxu0 %v1181
    %1529 = vmatpush1.bf16.msra.mxu0 %v1180
    %1530 = vmatprep.subr.bf16.mxu0 0
    %1531 = vmatpush1.bf16.msra.mxu0 0
    %1532 = vmatprep.subr.bf16.mxu0 0
    %1533 = vmatpush1.bf16.msra.mxu0 0
    %1534 = vmatprep.subr.bf16.mxu0 0
    %1535 = vmatpush1.bf16.msra.mxu0 0
    %1536 = vmatprep.subr.bf16.mxu0 0
    %1537 = vmatpush1.bf16.msra.mxu0 0
    %1538 = vmatprep.subr.bf16.mxu0 0
    %1539 = vmatpush1.bf16.msra.mxu0 0
    %1540 = vmatprep.subr.bf16.mxu0 0
    %1541 = vmatpush1.bf16.msra.mxu0 0
    %1542 = vmatprep.subr.bf16.mxu0 0
    %1543 = vmatpush1.bf16.msra.mxu0 0
    %1544 = vmatprep.subr.bf16.mxu0 0
    %1545 = vmatpush1.bf16.msra.mxu0 0
    %1546 = vmatprep.subr.bf16.mxu0 0
    %1547 = vmatpush1.bf16.msra.mxu0 0
    %1548 = vmatprep.subr.bf16.mxu0 0
    %1549 = vmatpush1.bf16.msra.mxu0 0
    %1550 = vmatprep.subr.bf16.mxu0 0
    %1551 = vmatpush1.bf16.msra.mxu0 0
    %1552 = vmatprep.subr.bf16.mxu0 0
    %1553 = vmatpush1.bf16.msra.mxu0 0
    %1554 = vmatprep.subr.bf16.mxu0 0
    %1555 = vmatpush1.bf16.msra.mxu0 0
    %1556 = vmatprep.subr.bf16.mxu0 0
    %1557 = vmatpush1.bf16.msra.mxu0 0
    %1558 = vmatprep.mubr.bf16.mxu0 0
    %1559 = vmatmul.mubr.bf16.gmra.mrb[0].mxu0 %v1319
    %v1560 = vpop.f32.mrb[0].mxu0
    %v1561 = vadd.f32 %v1520, %v1560
    %v1562 = vpop.f32.mrb[0].mxu0
    %v1563 = vadd.f32 %v1522, %v1562
    %v1564 = vpop.f32.mrb[0].mxu0
    %v1565 = vpop.f32.mrb[0].mxu0
    %1566 = vdwg.mxu0
    %vm1567 = vcmp.gt.f32.partialorder %v1438, 0.0
    %vm1568 = vcmp.gt.f32.partialorder %v1440, 0.0
    %vm1569 = vcmp.gt.f32.partialorder %v1561, 0.0
    %vm1570 = vcmp.gt.f32.partialorder %v1563, 0.0
    %v1571 = vstv %s62
    %v1572 = vmul.f32 %v1571, %v1438
    %v1573 = vmul.f32 %v1571, %v1440
    %v1574 = vmul.f32 %v1571, %v1561
    %v1575 = vmul.f32 %v1571, %v1563
    %v1576 = vsel %vm1567, %v1438, %v1572
    %v1577 = vsel %vm1568, %v1440, %v1573
    %v1578 = vsel %vm1569, %v1561, %v1574
    %v1579 = vsel %vm1570, %v1563, %v1575
    %1580 = vst [vmem:[#allocation9] sm:$0xff] %v1576
    %1581 = vst [vmem:[#allocation9 + $0x8] sm:$0xff] %v1577
    %1582 = vst [vmem:[#allocation9 + $0x10] sm:$0xff] %v1578
    %1583 = vst [vmem:[#allocation9 + $0x18] sm:$0xff] %v1579
    // Predicated region
    $region38: #{tpu_custom_call.1} parent=1 // pred_check
      _
    $region39: #{tpu_custom_call.1} parent=1 // pred_check_branch
      %1585 = sbr.rel (0) target = $region41
    $region40: #{tpu_custom_call.1} parent=1 // pred_region
      %s1587 = ssub.s32 512, 512
      %1588 = vsyncadd [#allocation6], %s1587
      %s1590 = sshll.u32 [#allocation9], 4
      %s1591 = int_to_ptr.vmem [resolvable:$true] %s1590
      %1593 = dma.vmem_to_hbm [thread:$0]  %s1591, 512, %s8, [#allocation6]
    $region41: #{tpu_custom_call.1} parent=1 // pred_fallthru
      _
    // Predicated region
    $region42: #{tpu_custom_call.1} parent=1 // pred_check
      _
    $region43: #{tpu_custom_call.1} parent=1 // pred_check_branch
      %1595 = sbr.rel (0) target = $region45
    $region44: #{tpu_custom_call.1} parent=1 // pred_region
      %1596 = dma.done [#allocation6], 512
    $region45: #{tpu_custom_call.1} parent=1 // pred_fallthru
      _
    %1597 = vsyncpa [#allocation5], 1
    %1598 = vsyncpa [#allocation8], 1
    %1599 = vsyncpa [#allocation6], 1

</llo_original>
